<compile_context>
chip_gen: v7x
topology: tpu7x:2x2x1
jax: 0.10.0
libtpu: 0.0.40
codegen_flags: <defaults>
</compile_context>

<pallas_src>
import jax
import jax.numpy as jnp
from jax import lax
from jax.experimental import pallas as pl
from jax.experimental.pallas import tpu as pltpu


def _round_up(x, m):
    return (x + m - 1) // m * m


def _make_kernel(*, T, Tt, Bt, Hp, S, needs_mask, act_dtype, unroll):
    """Builds the kernel with static tile parameters closed over."""
    Bsub = Bt // S

    def kernel(emb_ref, wx_ref, bxh_ref, wh_ref, wf_ref, bf_ref,
               out_ref, h_scr, xproj_scr):
        # emb_ref  : (Tt, Bt, E)    bf16  streamed time-major tile (double-buffered)
        # wx_ref   : (E, 2*Hp)      bf16  fused [Wzx | Whx]          (resident)
        # bxh_ref  : (1, 2*Hp)      f32   fused [bz  | bh ]          (resident)
        # wh_ref   : (Hp, 2*Hp)     bf16  fused [Wzh | Whh]          (resident)
        # wf_ref   : (1, Hp)        f32   fc weight row              (resident)
        # bf_ref   : (1, 1)         f32   fc bias                    (resident)
        # out_ref  : (Bt, 1)        f32
        # h_scr    : (Bt, Hp)       f32   carried hidden state (per batch block)
        # xproj_scr: (Tt, Bt, 2*Hp) f32   hoisted x-side projection for this tile
        t_idx = pl.program_id(1)

        @pl.when(t_idx == 0)
        def _init():
            h_scr[...] = jnp.zeros_like(h_scr)

        E = emb_ref.shape[-1]

        # ---- Hoisted x-side projection: ONE (Tt*Bt, E) @ (E, 2Hp) bf16 GEMM per
        # streamed tile (f32 acc), biases folded in.  Bt is a multiple of 16, so the
        # bf16 leading-dim collapse is layout-free (no f32 round trip).
        emb2d = emb_ref[...].reshape(Tt * Bt, E)
        xp = jnp.dot(emb2d, wx_ref[...], preferred_element_type=jnp.float32)
        xp = xp + bxh_ref[...]
        xproj_scr[...] = xp.reshape(Tt, Bt, 2 * Hp)

        wh = wh_ref[...]
        t0 = t_idx * Tt

        def step(i, hs):
            lin_x = xproj_scr[i]                              # (Bt, 2Hp) f32
            if needs_mask:
                live = (t0 + i < T).astype(jnp.float32)       # 0/1: padded step?
            new_hs = []
            # S independent batch sub-chains per step: sub-chain s's h@wh matmul can
            # overlap sub-chain s' sigmoid/tanh/blend in the VLIW schedule.
            for s in range(S):
                h = hs[s]                                     # (Bsub, Hp) f32
                lin = lin_x[s * Bsub:(s + 1) * Bsub, :] + jnp.dot(
                    h.astype(jnp.bfloat16), wh,
                    preferred_element_type=jnp.float32)
                z = jax.nn.sigmoid(lin[:, :Hp].astype(act_dtype)).astype(jnp.float32)
                h_tilde = jnp.tanh(lin[:, Hp:].astype(act_dtype)).astype(jnp.float32)
                if needs_mask:
                    z = z * live                              # padded step: h kept
                new_hs.append(h + z * (h_tilde - h))          # 3-op blend, f32 carry
            return tuple(new_hs)

        # Padded hidden lanes stay exactly 0 only because h starts at 0 (zero weight
        # columns -> h_tilde_pad = 0, blend halves h_pad each step).  If a nonzero
        # initial hidden state is ever supported, mask the padded lanes here.
        hs0 = tuple(h_scr[s * Bsub:(s + 1) * Bsub, :] for s in range(S))
        hs = lax.fori_loop(0, Tt, step, hs0, unroll=unroll)
        for s in range(S):
            h_scr[s * Bsub:(s + 1) * Bsub, :] = hs[s]

        @pl.when(t_idx == pl.num_programs(1) - 1)
        def _finalize():
            # Dropout(p=0.3) is identity at inference (eval mode).
            # fc (Hp -> 1) as a lane reduction instead of an N=1 MXU matmul; the
            # zero-padded fc row ignores padded hidden lanes.
            h = h_scr[...]
            logits = jnp.sum(h * wf_ref[...], axis=-1, keepdims=True) + bf_ref[...]
            out_ref[...] = jax.nn.sigmoid(logits)

    return kernel


def mingru_model_forward(x_ids, params, *, time_tile=64, batch_tile=128,
                         sub_chains=2, bf16_transcendentals=False):
    """x_ids: (B, T) int32 token ids.  Returns (B, 1) float32 in (0, 1)."""
    emb_table = params["embedding"]              # (V, E)
    wzx, wzh, bz = params["wzx"], params["wzh"], params["bz"]
    whx, whh, bh = params["whx"], params["whh"], params["bh"]
    wf, bf = params["wf"], params["bf"]

    B, T = x_ids.shape
    E = emb_table.shape[1]
    H = wzh.shape[0]
    Hp = _round_up(H, 128)                       # lane-dense hidden width

    # ---- Tile sizing -------------------------------------------------------
    # Batch tile: multiple of 16 (bf16 sublane pack => layout-free reshape) and as
    # large as the batch allows so the per-step recurrence matmul fills MXU rows.
    # On v7x choose batch_tile so Bp//Bt >= 2 (shards across both TensorCores).
    Bt = min(_round_up(batch_tile, 16), _round_up(B, 16))
    Bp = _round_up(B, Bt)
    # Time tile: pad T up to a multiple of Tt (padded steps masked in-kernel)
    # instead of shrinking Tt, so prime/awkward T doesn't collapse the tile to 1.
    Tt = max(1, min(time_tile, T))
    Tp = _round_up(T, Tt)
    # Independent batch sub-chains interleaved per step (each a multiple of 8 rows).
    S = max(1, min(sub_chains, Bt // 8))
    while Bt % S or (Bt // S) % 8:
        S -= 1

    # TODO(synk): embedding gather is a data-dependent lookup, done in plain JAX (a
    # Pallas version would need a manual DMA gather).  Table is cast to bf16 BEFORE
    # the gather (halves gather HBM bytes, no separate convert pass), time-major so
    # no (B,T,E)->(T,B,E) transpose pass is needed.
    emb_tm = emb_table.astype(jnp.bfloat16)[x_ids.T]      # (T, B, E) bf16
    pad_t, pad_b = Tp - T, Bp - B
    if pad_t or pad_b:
        emb_tm = jnp.pad(emb_tm, ((0, pad_t), (0, pad_b), (0, 0)))

    # Fused + zero-padded weights.  Padded hidden lanes stay exactly 0 through the
    # recurrence (zero weights/bias + zero-initialized h), and the zero-padded fc
    # row ignores them, so no masking is needed before the final sigmoid.
    wx = jnp.zeros((E, 2 * Hp), jnp.float32)
    wx = wx.at[:, :H].set(wzx).at[:, Hp:Hp + H].set(whx).astype(jnp.bfloat16)
    bxh = jnp.zeros((1, 2 * Hp), jnp.float32)
    bxh = bxh.at[:, :H].set(bz).at[:, Hp:Hp + H].set(bh)
    whf = jnp.zeros((Hp, 2 * Hp), jnp.float32)
    whf = whf.at[:H, :H].set(wzh).at[:H, Hp:Hp + H].set(whh).astype(jnp.bfloat16)
    wf_row = jnp.zeros((1, Hp), jnp.float32).at[:, :H].set(wf.T)
    bf2 = bf.reshape(1, 1).astype(jnp.float32)

    # ---- Explicit VMEM budget (keep well under 64 MiB/core on v7x, 128 on v5e/v6e).
    vmem_need = (
        2 * Tt * Bt * E * 2            # streamed emb tile, double-buffered, bf16
        + Tt * Bt * 2 * Hp * 4         # x-projection scratch, f32
        + Bt * Hp * 4                  # carried hidden state scratch, f32
        + (E + Hp) * 2 * Hp * 2        # resident wx + wh, bf16
        + (3 * Hp + 1) * 4             # resident biases + fc row, f32
        + 2 * Bt * 4                   # output block
    )
    vmem_limit = int(min(max(2 * vmem_need, 32 * 1024 * 1024), 100 * 1024 * 1024))

    kernel = _make_kernel(
        T=T, Tt=Tt, Bt=Bt, Hp=Hp, S=S,
        needs_mask=(Tp != T),
        act_dtype=jnp.bfloat16 if bf16_transcendentals else jnp.float32,
        unroll=Tt if Tt <= 8 else 4,
    )

    # Resident (grid-invariant) operands: untiled, whole-array in VMEM.
    resident = pl.BlockSpec(memory_space=pltpu.MemorySpace.VMEM)

    grid = (Bp // Bt, Tp // Tt)                  # (parallel batch, serial time)
    out_p = pl.pallas_call(
        kernel,
        out_shape=jax.ShapeDtypeStruct((Bp, 1), jnp.float32),
        grid_spec=pltpu.PrefetchScalarGridSpec(
            num_scalar_prefetch=0,
            grid=grid,
            in_specs=[
                pl.BlockSpec((Tt, Bt, E), lambda b, t: (t, b, 0)),   # streamed
                resident, resident, resident, resident, resident,
            ],
            out_specs=pl.BlockSpec((Bt, 1), lambda b, t: (b, 0)),
            scratch_shapes=[
                pltpu.VMEM((Bt, Hp), jnp.float32),           # carried h
                pltpu.VMEM((Tt, Bt, 2 * Hp), jnp.float32),   # hoisted x-projection
            ],
        ),
        compiler_params=pltpu.CompilerParams(
            dimension_semantics=("parallel", "arbitrary"),
            vmem_limit_bytes=vmem_limit,
        ),
    )(emb_tm, wx, bxh, whf, wf_row, bf2)
    return out_p[:B]


def make_params(key, vocab_size, embedding_dim, hidden_size):
    ks = jax.random.split(key, 8)
    E, H = embedding_dim, hidden_size
    # nn.Linear(in=E+H, out=H): weight (H, E+H).  Stored transposed & split.
    wz_t = jax.random.normal(ks[1], (E + H, H), jnp.float32) * 0.1
    wh_t = jax.random.normal(ks[2], (E + H, H), jnp.float32) * 0.1
    return {
        "embedding": jax.random.normal(ks[0], (vocab_size, E), jnp.float32) * 0.5,
        "wzx": wz_t[:E], "wzh": wz_t[E:],
        "bz": jax.random.normal(ks[3], (1, H), jnp.float32) * 0.1,
        "whx": wh_t[:E], "whh": wh_t[E:],
        "bh": jax.random.normal(ks[4], (1, H), jnp.float32) * 0.1,
        "wf": jax.random.normal(ks[5], (H, 1), jnp.float32) * 0.1,
        "bf": jax.random.normal(ks[6], (1, 1), jnp.float32) * 0.1,
    }


def reference_forward(x_ids, params):
    """Pure-JAX f32 reference mirroring the PyTorch forward (eval mode)."""
    emb = params["embedding"][x_ids]             # (B, T, E)
    B, T, E = emb.shape
    H = params["wzh"].shape[0]
    h = jnp.zeros((B, H), jnp.float32)
    for t in range(T):
        x_t = emb[:, t, :]
        z = jax.nn.sigmoid(x_t @ params["wzx"] + h @ params["wzh"] + params["bz"])
        h_t = jnp.tanh(x_t @ params["whx"] + h @ params["whh"] + params["bh"])
        h = (1.0 - z) * h + z * h_t
    return jax.nn.sigmoid(h @ params["wf"] + params["bf"])


if __name__ == "__main__":
    # Small, deterministic configuration.
    vocab_size, embedding_dim, hidden_size = 32, 16, 32
    batch, seq_len = 2, 8

    key = jax.random.PRNGKey(0)
    k_params, k_ids = jax.random.split(key)
    params = make_params(k_params, vocab_size, embedding_dim, hidden_size)
    x_ids = jax.random.randint(k_ids, (batch, seq_len), 0, vocab_size, dtype=jnp.int32)

    ref = reference_forward(x_ids, params)

    # time_tile=4 -> grid (1, 2): exercises the pipelined time axis, the carried
    # hidden state and the 2 interleaved batch sub-chains.
    out = jax.block_until_ready(mingru_model_forward(x_ids, params, time_tile=4))
    assert out.shape == (batch, 1)
    assert jnp.allclose(out, ref, atol=2e-2, rtol=2e-2), (out, ref)

    # time_tile=5 -> T padded 8 -> 10: exercises the masked (padded-step) path.
    out2 = jax.block_until_ready(mingru_model_forward(x_ids, params, time_tile=5))
    assert jnp.allclose(out2, ref, atol=2e-2, rtol=2e-2), (out2, ref)

    print("KERNEL_OK")
</pallas_src>

<mosaic_0001>
module attributes {stable_mosaic.version = 11 : i64} {
  func.func @kernel(%arg0: i32, %arg1: i32, %arg2: memref<4x16x16xbf16, #tpu.memory_space<vmem>>, %arg3: memref<16x256xbf16, #tpu.memory_space<vmem>>, %arg4: memref<1x256xf32, #tpu.memory_space<vmem>>, %arg5: memref<128x256xbf16, #tpu.memory_space<vmem>>, %arg6: memref<1x128xf32, #tpu.memory_space<vmem>>, %arg7: memref<1x1xf32, #tpu.memory_space<vmem>>, %arg8: memref<16x1xf32, #tpu.memory_space<vmem>>, %arg9: memref<16x128xf32, #tpu.memory_space<vmem>>, %arg10: memref<4x16x256xf32, #tpu.memory_space<vmem>>) attributes {dimension_semantics = [#tpu.dimension_semantics<parallel>, #tpu.dimension_semantics<arbitrary>], iteration_bounds = array<i64: 1, 2>, scalar_prefetch = 0 : i64, scratch_operands = 2 : i64, tpu.core_type = #tpu.core_type<tc>, window_params = [{transform_indices = @transform_0, window_bounds = array<i64: 4, 16, 16>}, {pipeline_mode = #tpu.pipeline_mode<synchronous>, transform_indices = @transform_1, window_bounds = array<i64: 16, 256>}, {pipeline_mode = #tpu.pipeline_mode<synchronous>, transform_indices = @transform_2, window_bounds = array<i64: 1, 256>}, {pipeline_mode = #tpu.pipeline_mode<synchronous>, transform_indices = @transform_3, window_bounds = array<i64: 128, 256>}, {pipeline_mode = #tpu.pipeline_mode<synchronous>, transform_indices = @transform_4, window_bounds = array<i64: 1, 128>}, {pipeline_mode = #tpu.pipeline_mode<synchronous>, transform_indices = @transform_5, window_bounds = array<i64: 1, 1>}, {transform_indices = @transform_6, window_bounds = array<i64: 16, 1>}]} {
    %c0_i32 = arith.constant 0 : i32
    %0 = arith.cmpi eq, %arg1, %c0_i32 : i32
    %1 = arith.extui %0 : i1 to i32
    %c0_i32_0 = arith.constant 0 : i32
    %2 = arith.cmpi ne, %1, %c0_i32_0 : i32
    scf.if %2 {
      %cst_46 = arith.constant 0.000000e+00 : f32
      %152 = vector.broadcast %cst_46 : f32 to vector<16x128xf32>
      %c0_47 = arith.constant 0 : index
      %c0_48 = arith.constant 0 : index
      %153 = vector.load %arg9[%c0_47, %c0_48] : memref<16x128xf32, #tpu.memory_space<vmem>>, vector<16x128xf32>
      tpu.vector_store %arg9[%c0_47, %c0_48], %152 {strides = array<i32>} : memref<16x128xf32, #tpu.memory_space<vmem>>, vector<16x128xf32>,
    } else {
    }
    %c0 = arith.constant 0 : index
    %c0_1 = arith.constant 0 : index
    %c0_2 = arith.constant 0 : index
    %3 = vector.load %arg2[%c0, %c0_1, %c0_2] : memref<4x16x16xbf16, #tpu.memory_space<vmem>>, vector<4x16x16xbf16>
    %4 = vector.shape_cast %3 : vector<4x16x16xbf16> to vector<64x16xbf16>
    %c0_3 = arith.constant 0 : index
    %c0_4 = arith.constant 0 : index
    %5 = vector.load %arg3[%c0_3, %c0_4] : memref<16x256xbf16, #tpu.memory_space<vmem>>, vector<16x256xbf16>
    %cst = arith.constant dense<0.000000e+00> : vector<64x256xf32>
    %6 = tpu.matmul %4, %5, %cst {dimension_numbers = #tpu.dot_dimension_numbers<[1], [0], [0], [1], [0, 0, 1, 1], [], []>} : vector<64x16xbf16>, vector<16x256xbf16>, vector<64x256xf32> -> vector<64x256xf32>
    %c0_5 = arith.constant 0 : index
    %c0_6 = arith.constant 0 : index
    %7 = vector.load %arg4[%c0_5, %c0_6] : memref<1x256xf32, #tpu.memory_space<vmem>>, vector<1x256xf32>
    %8 = vector.broadcast %7 : vector<1x256xf32> to vector<64x256xf32>
    %9 = arith.addf %6, %8 : vector<64x256xf32>
    %10 = vector.shape_cast %9 : vector<64x256xf32> to vector<4x16x256xf32>
    %c0_7 = arith.constant 0 : index
    %c0_8 = arith.constant 0 : index
    %c0_9 = arith.constant 0 : index
    %11 = vector.load %arg10[%c0_7, %c0_8, %c0_9] : memref<4x16x256xf32, #tpu.memory_space<vmem>>, vector<4x16x256xf32>
    tpu.vector_store %arg10[%c0_7, %c0_8, %c0_9], %10 {strides = array<i32>} : memref<4x16x256xf32, #tpu.memory_space<vmem>>, vector<4x16x256xf32>,
    %c0_10 = arith.constant 0 : index
    %c0_11 = arith.constant 0 : index
    %12 = vector.load %arg5[%c0_10, %c0_11] : memref<128x256xbf16, #tpu.memory_space<vmem>>, vector<128x256xbf16>
    %c0_12 = arith.constant 0 : index
    %c0_13 = arith.constant 0 : index
    %13 = vector.load %arg9[%c0_12, %c0_13] : memref<16x128xf32, #tpu.memory_space<vmem>>, vector<8x128xf32>
    %c8 = arith.constant 8 : index
    %c0_14 = arith.constant 0 : index
    %14 = vector.load %arg9[%c8, %c0_14] : memref<16x128xf32, #tpu.memory_space<vmem>>, vector<8x128xf32>
    %c0_i32_15 = arith.constant 0 : i32
    %15 = arith.index_cast %c0_i32_15 : i32 to index
    %c0_16 = arith.constant 0 : index
    %c0_17 = arith.constant 0 : index
    %16 = vector.load %arg10[%15, %c0_16, %c0_17] : memref<4x16x256xf32, #tpu.memory_space<vmem>>, vector<1x16x256xf32>
    %17 = vector.shape_cast %16 : vector<1x16x256xf32> to vector<16x256xf32>
    %18 = vector.extract_strided_slice %17 {offsets = [0, 0], sizes = [8, 256], strides = [1, 1]} : vector<16x256xf32> to vector<8x256xf32>
    %19 = arith.truncf %13 : vector<8x128xf32> to vector<8x128xbf16>
    %cst_18 = arith.constant dense<0.000000e+00> : vector<8x256xf32>
    %20 = tpu.matmul %19, %12, %cst_18 {dimension_numbers = #tpu.dot_dimension_numbers<[1], [0], [0], [1], [0, 0, 1, 1], [], []>} : vector<8x128xbf16>, vector<128x256xbf16>, vector<8x256xf32> -> vector<8x256xf32>
    %21 = arith.addf %18, %20 : vector<8x256xf32>
    %22 = vector.extract_strided_slice %21 {offsets = [0, 0], sizes = [8, 128], strides = [1, 1]} : vector<8x256xf32> to vector<8x128xf32>
    %23 = arith.negf %22 : vector<8x128xf32>
    %24 = math.exp %23 : vector<8x128xf32>
    %cst_19 = arith.constant 1.000000e+00 : f32
    %25 = vector.broadcast %cst_19 : f32 to vector<8x128xf32>
    %26 = arith.addf %25, %24 : vector<8x128xf32>
    %27 = arith.divf %25, %26 : vector<8x128xf32>
    %28 = vector.extract_strided_slice %21 {offsets = [0, 128], sizes = [8, 128], strides = [1, 1]} : vector<8x256xf32> to vector<8x128xf32>
    %29 = math.tanh %28 : vector<8x128xf32>
    %30 = arith.subf %29, %13 : vector<8x128xf32>
    %31 = arith.mulf %27, %30 : vector<8x128xf32>
    %32 = arith.addf %13, %31 : vector<8x128xf32>
    %33 = vector.extract_strided_slice %17 {offsets = [8, 0], sizes = [8, 256], strides = [1, 1]} : vector<16x256xf32> to vector<8x256xf32>
    %34 = arith.truncf %14 : vector<8x128xf32> to vector<8x128xbf16>
    %cst_20 = arith.constant dense<0.000000e+00> : vector<8x256xf32>
    %35 = tpu.matmul %34, %12, %cst_20 {dimension_numbers = #tpu.dot_dimension_numbers<[1], [0], [0], [1], [0, 0, 1, 1], [], []>} : vector<8x128xbf16>, vector<128x256xbf16>, vector<8x256xf32> -> vector<8x256xf32>
    %36 = arith.addf %33, %35 : vector<8x256xf32>
    %37 = vector.extract_strided_slice %36 {offsets = [0, 0], sizes = [8, 128], strides = [1, 1]} : vector<8x256xf32> to vector<8x128xf32>
    %38 = arith.negf %37 : vector<8x128xf32>
    %39 = math.exp %38 : vector<8x128xf32>
    %cst_21 = arith.constant 1.000000e+00 : f32
    %40 = vector.broadcast %cst_21 : f32 to vector<8x128xf32>
    %41 = arith.addf %40, %39 : vector<8x128xf32>
    %42 = arith.divf %40, %41 : vector<8x128xf32>
    %43 = vector.extract_strided_slice %36 {offsets = [0, 128], sizes = [8, 128], strides = [1, 1]} : vector<8x256xf32> to vector<8x128xf32>
    %44 = math.tanh %43 : vector<8x128xf32>
    %45 = arith.subf %44, %14 : vector<8x128xf32>
    %46 = arith.mulf %42, %45 : vector<8x128xf32>
    %47 = arith.addf %14, %46 : vector<8x128xf32>
    %c1_i32 = arith.constant 1 : i32
    %48 = arith.index_cast %c1_i32 : i32 to index
    %c0_22 = arith.constant 0 : index
    %c0_23 = arith.constant 0 : index
    %49 = vector.load %arg10[%48, %c0_22, %c0_23] : memref<4x16x256xf32, #tpu.memory_space<vmem>>, vector<1x16x256xf32>
    %50 = vector.shape_cast %49 : vector<1x16x256xf32> to vector<16x256xf32>
    %51 = vector.extract_strided_slice %50 {offsets = [0, 0], sizes = [8, 256], strides = [1, 1]} : vector<16x256xf32> to vector<8x256xf32>
    %52 = arith.truncf %32 : vector<8x128xf32> to vector<8x128xbf16>
    %cst_24 = arith.constant dense<0.000000e+00> : vector<8x256xf32>
    %53 = tpu.matmul %52, %12, %cst_24 {dimension_numbers = #tpu.dot_dimension_numbers<[1], [0], [0], [1], [0, 0, 1, 1], [], []>} : vector<8x128xbf16>, vector<128x256xbf16>, vector<8x256xf32> -> vector<8x256xf32>
    %54 = arith.addf %51, %53 : vector<8x256xf32>
    %55 = vector.extract_strided_slice %54 {offsets = [0, 0], sizes = [8, 128], strides = [1, 1]} : vector<8x256xf32> to vector<8x128xf32>
    %56 = arith.negf %55 : vector<8x128xf32>
    %57 = math.exp %56 : vector<8x128xf32>
    %cst_25 = arith.constant 1.000000e+00 : f32
    %58 = vector.broadcast %cst_25 : f32 to vector<8x128xf32>
    %59 = arith.addf %58, %57 : vector<8x128xf32>
    %60 = arith.divf %58, %59 : vector<8x128xf32>
    %61 = vector.extract_strided_slice %54 {offsets = [0, 128], sizes = [8, 128], strides = [1, 1]} : vector<8x256xf32> to vector<8x128xf32>
    %62 = math.tanh %61 : vector<8x128xf32>
    %63 = arith.subf %62, %32 : vector<8x128xf32>
    %64 = arith.mulf %60, %63 : vector<8x128xf32>
    %65 = arith.addf %32, %64 : vector<8x128xf32>
    %66 = vector.extract_strided_slice %50 {offsets = [8, 0], sizes = [8, 256], strides = [1, 1]} : vector<16x256xf32> to vector<8x256xf32>
    %67 = arith.truncf %47 : vector<8x128xf32> to vector<8x128xbf16>
    %cst_26 = arith.constant dense<0.000000e+00> : vector<8x256xf32>
    %68 = tpu.matmul %67, %12, %cst_26 {dimension_numbers = #tpu.dot_dimension_numbers<[1], [0], [0], [1], [0, 0, 1, 1], [], []>} : vector<8x128xbf16>, vector<128x256xbf16>, vector<8x256xf32> -> vector<8x256xf32>
    %69 = arith.addf %66, %68 : vector<8x256xf32>
    %70 = vector.extract_strided_slice %69 {offsets = [0, 0], sizes = [8, 128], strides = [1, 1]} : vector<8x256xf32> to vector<8x128xf32>
    %71 = arith.negf %70 : vector<8x128xf32>
    %72 = math.exp %71 : vector<8x128xf32>
    %cst_27 = arith.constant 1.000000e+00 : f32
    %73 = vector.broadcast %cst_27 : f32 to vector<8x128xf32>
    %74 = arith.addf %73, %72 : vector<8x128xf32>
    %75 = arith.divf %73, %74 : vector<8x128xf32>
    %76 = vector.extract_strided_slice %69 {offsets = [0, 128], sizes = [8, 128], strides = [1, 1]} : vector<8x256xf32> to vector<8x128xf32>
    %77 = math.tanh %76 : vector<8x128xf32>
    %78 = arith.subf %77, %47 : vector<8x128xf32>
    %79 = arith.mulf %75, %78 : vector<8x128xf32>
    %80 = arith.addf %47, %79 : vector<8x128xf32>
    %c2_i32 = arith.constant 2 : i32
    %81 = arith.index_cast %c2_i32 : i32 to index
    %c0_28 = arith.constant 0 : index
    %c0_29 = arith.constant 0 : index
    %82 = vector.load %arg10[%81, %c0_28, %c0_29] : memref<4x16x256xf32, #tpu.memory_space<vmem>>, vector<1x16x256xf32>
    %83 = vector.shape_cast %82 : vector<1x16x256xf32> to vector<16x256xf32>
    %84 = vector.extract_strided_slice %83 {offsets = [0, 0], sizes = [8, 256], strides = [1, 1]} : vector<16x256xf32> to vector<8x256xf32>
    %85 = arith.truncf %65 : vector<8x128xf32> to vector<8x128xbf16>
    %cst_30 = arith.constant dense<0.000000e+00> : vector<8x256xf32>
    %86 = tpu.matmul %85, %12, %cst_30 {dimension_numbers = #tpu.dot_dimension_numbers<[1], [0], [0], [1], [0, 0, 1, 1], [], []>} : vector<8x128xbf16>, vector<128x256xbf16>, vector<8x256xf32> -> vector<8x256xf32>
    %87 = arith.addf %84, %86 : vector<8x256xf32>
    %88 = vector.extract_strided_slice %87 {offsets = [0, 0], sizes = [8, 128], strides = [1, 1]} : vector<8x256xf32> to vector<8x128xf32>
    %89 = arith.negf %88 : vector<8x128xf32>
    %90 = math.exp %89 : vector<8x128xf32>
    %cst_31 = arith.constant 1.000000e+00 : f32
    %91 = vector.broadcast %cst_31 : f32 to vector<8x128xf32>
    %92 = arith.addf %91, %90 : vector<8x128xf32>
    %93 = arith.divf %91, %92 : vector<8x128xf32>
    %94 = vector.extract_strided_slice %87 {offsets = [0, 128], sizes = [8, 128], strides = [1, 1]} : vector<8x256xf32> to vector<8x128xf32>
    %95 = math.tanh %94 : vector<8x128xf32>
    %96 = arith.subf %95, %65 : vector<8x128xf32>
    %97 = arith.mulf %93, %96 : vector<8x128xf32>
    %98 = arith.addf %65, %97 : vector<8x128xf32>
    %99 = vector.extract_strided_slice %83 {offsets = [8, 0], sizes = [8, 256], strides = [1, 1]} : vector<16x256xf32> to vector<8x256xf32>
    %100 = arith.truncf %80 : vector<8x128xf32> to vector<8x128xbf16>
    %cst_32 = arith.constant dense<0.000000e+00> : vector<8x256xf32>
    %101 = tpu.matmul %100, %12, %cst_32 {dimension_numbers = #tpu.dot_dimension_numbers<[1], [0], [0], [1], [0, 0, 1, 1], [], []>} : vector<8x128xbf16>, vector<128x256xbf16>, vector<8x256xf32> -> vector<8x256xf32>
    %102 = arith.addf %99, %101 : vector<8x256xf32>
    %103 = vector.extract_strided_slice %102 {offsets = [0, 0], sizes = [8, 128], strides = [1, 1]} : vector<8x256xf32> to vector<8x128xf32>
    %104 = arith.negf %103 : vector<8x128xf32>
    %105 = math.exp %104 : vector<8x128xf32>
    %cst_33 = arith.constant 1.000000e+00 : f32
    %106 = vector.broadcast %cst_33 : f32 to vector<8x128xf32>
    %107 = arith.addf %106, %105 : vector<8x128xf32>
    %108 = arith.divf %106, %107 : vector<8x128xf32>
    %109 = vector.extract_strided_slice %102 {offsets = [0, 128], sizes = [8, 128], strides = [1, 1]} : vector<8x256xf32> to vector<8x128xf32>
    %110 = math.tanh %109 : vector<8x128xf32>
    %111 = arith.subf %110, %80 : vector<8x128xf32>
    %112 = arith.mulf %108, %111 : vector<8x128xf32>
    %113 = arith.addf %80, %112 : vector<8x128xf32>
    %c3_i32 = arith.constant 3 : i32
    %114 = arith.index_cast %c3_i32 : i32 to index
    %c0_34 = arith.constant 0 : index
    %c0_35 = arith.constant 0 : index
    %115 = vector.load %arg10[%114, %c0_34, %c0_35] : memref<4x16x256xf32, #tpu.memory_space<vmem>>, vector<1x16x256xf32>
    %116 = vector.shape_cast %115 : vector<1x16x256xf32> to vector<16x256xf32>
    %117 = vector.extract_strided_slice %116 {offsets = [0, 0], sizes = [8, 256], strides = [1, 1]} : vector<16x256xf32> to vector<8x256xf32>
    %118 = arith.truncf %98 : vector<8x128xf32> to vector<8x128xbf16>
    %cst_36 = arith.constant dense<0.000000e+00> : vector<8x256xf32>
    %119 = tpu.matmul %118, %12, %cst_36 {dimension_numbers = #tpu.dot_dimension_numbers<[1], [0], [0], [1], [0, 0, 1, 1], [], []>} : vector<8x128xbf16>, vector<128x256xbf16>, vector<8x256xf32> -> vector<8x256xf32>
    %120 = arith.addf %117, %119 : vector<8x256xf32>
    %121 = vector.extract_strided_slice %120 {offsets = [0, 0], sizes = [8, 128], strides = [1, 1]} : vector<8x256xf32> to vector<8x128xf32>
    %122 = arith.negf %121 : vector<8x128xf32>
    %123 = math.exp %122 : vector<8x128xf32>
    %cst_37 = arith.constant 1.000000e+00 : f32
    %124 = vector.broadcast %cst_37 : f32 to vector<8x128xf32>
    %125 = arith.addf %124, %123 : vector<8x128xf32>
    %126 = arith.divf %124, %125 : vector<8x128xf32>
    %127 = vector.extract_strided_slice %120 {offsets = [0, 128], sizes = [8, 128], strides = [1, 1]} : vector<8x256xf32> to vector<8x128xf32>
    %128 = math.tanh %127 : vector<8x128xf32>
    %129 = arith.subf %128, %98 : vector<8x128xf32>
    %130 = arith.mulf %126, %129 : vector<8x128xf32>
    %131 = arith.addf %98, %130 : vector<8x128xf32>
    %132 = vector.extract_strided_slice %116 {offsets = [8, 0], sizes = [8, 256], strides = [1, 1]} : vector<16x256xf32> to vector<8x256xf32>
    %133 = arith.truncf %113 : vector<8x128xf32> to vector<8x128xbf16>
    %cst_38 = arith.constant dense<0.000000e+00> : vector<8x256xf32>
    %134 = tpu.matmul %133, %12, %cst_38 {dimension_numbers = #tpu.dot_dimension_numbers<[1], [0], [0], [1], [0, 0, 1, 1], [], []>} : vector<8x128xbf16>, vector<128x256xbf16>, vector<8x256xf32> -> vector<8x256xf32>
    %135 = arith.addf %132, %134 : vector<8x256xf32>
    %136 = vector.extract_strided_slice %135 {offsets = [0, 0], sizes = [8, 128], strides = [1, 1]} : vector<8x256xf32> to vector<8x128xf32>
    %137 = arith.negf %136 : vector<8x128xf32>
    %138 = math.exp %137 : vector<8x128xf32>
    %cst_39 = arith.constant 1.000000e+00 : f32
    %139 = vector.broadcast %cst_39 : f32 to vector<8x128xf32>
    %140 = arith.addf %139, %138 : vector<8x128xf32>
    %141 = arith.divf %139, %140 : vector<8x128xf32>
    %142 = vector.extract_strided_slice %135 {offsets = [0, 128], sizes = [8, 128], strides = [1, 1]} : vector<8x256xf32> to vector<8x128xf32>
    %143 = math.tanh %142 : vector<8x128xf32>
    %144 = arith.subf %143, %113 : vector<8x128xf32>
    %145 = arith.mulf %141, %144 : vector<8x128xf32>
    %146 = arith.addf %113, %145 : vector<8x128xf32>
    %c4_i32 = arith.constant 4 : i32
    %c0_40 = arith.constant 0 : index
    %c0_41 = arith.constant 0 : index
    %147 = vector.load %arg9[%c0_40, %c0_41] : memref<16x128xf32, #tpu.memory_space<vmem>>, vector<8x128xf32>
    tpu.vector_store %arg9[%c0_40, %c0_41], %131 {strides = array<i32>} : memref<16x128xf32, #tpu.memory_space<vmem>>, vector<8x128xf32>,
    %c8_42 = arith.constant 8 : index
    %c0_43 = arith.constant 0 : index
    %148 = vector.load %arg9[%c8_42, %c0_43] : memref<16x128xf32, #tpu.memory_space<vmem>>, vector<8x128xf32>
    tpu.vector_store %arg9[%c8_42, %c0_43], %146 {strides = array<i32>} : memref<16x128xf32, #tpu.memory_space<vmem>>, vector<8x128xf32>,
    %c1_i32_44 = arith.constant 1 : i32
    %149 = arith.cmpi eq, %arg1, %c1_i32_44 : i32
    %150 = arith.extui %149 : i1 to i32
    %c0_i32_45 = arith.constant 0 : i32
    %151 = arith.cmpi ne, %150, %c0_i32_45 : i32
    scf.if %151 {
      %c0_46 = arith.constant 0 : index
      %c0_47 = arith.constant 0 : index
      %152 = vector.load %arg9[%c0_46, %c0_47] : memref<16x128xf32, #tpu.memory_space<vmem>>, vector<16x128xf32>
      %c0_48 = arith.constant 0 : index
      %c0_49 = arith.constant 0 : index
      %153 = vector.load %arg6[%c0_48, %c0_49] : memref<1x128xf32, #tpu.memory_space<vmem>>, vector<1x128xf32>
      %154 = vector.broadcast %153 : vector<1x128xf32> to vector<16x128xf32>
      %155 = arith.mulf %152, %154 : vector<16x128xf32>
      %cst_50 = arith.constant dense<0.000000e+00> : vector<16xf32>
      %156 = vector.multi_reduction <add>, %155, %cst_50 [1] : vector<16x128xf32> to vector<16xf32>
      %157 = vector.shape_cast %156 : vector<16xf32> to vector<16x1xf32>
      %c0_51 = arith.constant 0 : index
      %c0_52 = arith.constant 0 : index
      %158 = vector.load %arg7[%c0_51, %c0_52] : memref<1x1xf32, #tpu.memory_space<vmem>>, vector<1x1xf32>
      %159 = vector.broadcast %158 : vector<1x1xf32> to vector<16x1xf32>
      %160 = arith.addf %157, %159 : vector<16x1xf32>
      %161 = arith.negf %160 : vector<16x1xf32>
      %162 = math.exp %161 : vector<16x1xf32>
      %cst_53 = arith.constant 1.000000e+00 : f32
      %163 = vector.broadcast %cst_53 : f32 to vector<16x1xf32>
      %164 = arith.addf %163, %162 : vector<16x1xf32>
      %165 = arith.divf %163, %164 : vector<16x1xf32>
      %c0_54 = arith.constant 0 : index
      %c0_55 = arith.constant 0 : index
      %166 = vector.load %arg8[%c0_54, %c0_55] : memref<16x1xf32, #tpu.memory_space<vmem>>, vector<16x1xf32>
      tpu.vector_store %arg8[%c0_54, %c0_55], %165 {strides = array<i32>} : memref<16x1xf32, #tpu.memory_space<vmem>>, vector<16x1xf32>,
    } else {
    }
    return
  }
  func.func @transform_0(%arg0: i32, %arg1: i32) -> (i32, i32, i32) {
    %c0_i32 = arith.constant 0 : i32
    %c0_i32_0 = arith.constant 0 : i32
    return %arg1, %arg0, %c0_i32 : i32, i32, i32
  }
  func.func @transform_1(%arg0: i32, %arg1: i32) -> (i32, i32) {
    %c0_i32 = arith.constant 0 : i32
    %c0_i32_0 = arith.constant 0 : i32
    %c0_i32_1 = arith.constant 0 : i32
    return %c0_i32, %c0_i32_0 : i32, i32
  }
  func.func @transform_2(%arg0: i32, %arg1: i32) -> (i32, i32) {
    %c0_i32 = arith.constant 0 : i32
    %c0_i32_0 = arith.constant 0 : i32
    %c0_i32_1 = arith.constant 0 : i32
    return %c0_i32, %c0_i32_0 : i32, i32
  }
  func.func @transform_3(%arg0: i32, %arg1: i32) -> (i32, i32) {
    %c0_i32 = arith.constant 0 : i32
    %c0_i32_0 = arith.constant 0 : i32
    %c0_i32_1 = arith.constant 0 : i32
    return %c0_i32, %c0_i32_0 : i32, i32
  }
  func.func @transform_4(%arg0: i32, %arg1: i32) -> (i32, i32) {
    %c0_i32 = arith.constant 0 : i32
    %c0_i32_0 = arith.constant 0 : i32
    %c0_i32_1 = arith.constant 0 : i32
    return %c0_i32, %c0_i32_0 : i32, i32
  }
  func.func @transform_5(%arg0: i32, %arg1: i32) -> (i32, i32) {
    %c0_i32 = arith.constant 0 : i32
    %c0_i32_0 = arith.constant 0 : i32
    %c0_i32_1 = arith.constant 0 : i32
    return %c0_i32, %c0_i32_0 : i32, i32
  }
  func.func @transform_6(%arg0: i32, %arg1: i32) -> (i32, i32) {
    %c0_i32 = arith.constant 0 : i32
    %c0_i32_0 = arith.constant 0 : i32
    return %arg0, %c0_i32 : i32, i32
  }
}

</mosaic_0001>

<llo_original>
// kernel: tpu_custom_call.1
$region0: #{tpu_custom_call.1}
  #allocation0 [shape = 'u32[]', space=smem, size = 0x4, offset = 0x4, fixed_abs, tag = 'smem constant byte address 0x4 - core index']
  #allocation1 [shape = 'u32[144,128]{1,0:T(1,128)}', space=vmem, size = 0x12000, scoped, tag = 'internal scratch']
  #allocation2 [shape = 'f32[16,128]{1,0:T(8,128)}', space=vmem, size = 0x2000, scoped, tag = 'scratch operand']
  #allocation3 [shape = 'f32[4,16,256]{2,1,0:T(8,128)}', space=vmem, size = 0x10000, scoped, tag = 'scratch operand']
  #allocation4 [shape = 'f32[1,1]{1,0:T(1,128)S(1)}', space=vmem, size = 0x200, scoped, tag = 'scoped memory for tpu_custom_call.1']
  %s0 = inlined_call_operand.hbm [shape: bf16[8,16,16], index: 0, kind: input, shape index: {}]
  %s1 = inlined_call_operand.hbm [shape: bf16[16,256], index: 1, kind: input, shape index: {}]
  %s2 = inlined_call_operand.vmem [shape: f32[1,256], index: 2, kind: input, shape index: {}]
  %s3 = inlined_call_operand.hbm [shape: bf16[128,256], index: 3, kind: input, shape index: {}]
  %s4 = inlined_call_operand.vmem [shape: f32[1,128], index: 4, kind: input, shape index: {}]
  %s5 = inlined_call_operand.<no memory space> [shape: f32[1,1], index: 5, kind: input, shape index: {}]
  %s6 = inlined_call_operand.vmem [shape: f32[16,1], index: 6, kind: output, shape index: {}]
  %s7 = sld [smem:[#allocation0]]
  $region77: #{tpu_custom_call.1} parent=0
    _
  %s9 = ssub.s32 1, %s7
  %s10 = scalar_select 0, %s9, %s7
  %v11 = vstv %s5
  %12 = vst [vmem:[#allocation4] sm:$0x1] %v11
  $region1: #{tpu_custom_call.1} parent=0
    #allocation5 [shape = 'u8[32768]{0}', space=vmem, size = 0x8000, scoped, tag = 'input window, operand 0']
    #allocation6 [shape = 's32[2]{0}', space=sflag, size = 0x8, scoped, tag = 'scoped memory for tpu_custom_call.1']
    #allocation7 [shape = 'u8[8192]{0}', space=vmem, size = 0x2000, scoped, tag = 'input window, operand 1, single buffered']
    #allocation8 [shape = 's32[1]{0}', space=sflag, size = 0x4, scoped, tag = 'scoped memory for tpu_custom_call.1']
    #allocation9 [shape = 'u8[65536]{0}', space=vmem, size = 0x10000, scoped, tag = 'input window, operand 3, single buffered']
    %13 = vsyncpa [#allocation6], 0
    %s14 = scalar_lea.sflag [#allocation6], 1
    %15 = vsyncpa %s14, 0
    %16 = vsyncpa [#allocation8], 0
    loop: start=0, step=1, limit=4
    $region2: #{tpu_custom_call.1} parent=1 // loop_pre_header
      _
    $region3: #{tpu_custom_call.1} parent=1 // loop_header
      %s18 = sphi 0, %s22
      %p19 = scmp.ge.s32.totalorder %s18, 4
      %s25 = sphi 0, %s37
      %s26 = sphi 0, %s33
      %s27 = sphi 0, %s25
      %s28 = sphi 0, %s26
      %s29 = sphi 0, %s27
      %s30 = sphi 0, %s28
      %s42 = sphi 0, %s44
      %s45 = sphi 0, %s42
      %s46 = sphi 0, %s45
      %s62 = sphi 0, %s46
      %s66 = sphi 0, %s66
      %s68 = sphi 0, %s66
      %s69 = sphi 0, %s68
      %s83 = sphi 0, %s69
      %s87 = sphi 0, %s87
      %s89 = sphi 0, %s87
      %s90 = sphi 0, %s89
      %s104 = sphi 0, %s90
      %s108 = sphi 0, %s108
      %s110 = sphi 0, %s108
      %s111 = sphi 0, %s110
      %s125 = sphi 0, %s111
      %s129 = sphi 0, %s129
      %s131 = sphi 0, %s129
      %s132 = sphi 0, %s131
      %s146 = sphi 0, %s132
      %s150 = sphi 0, %s150
      %s152 = sphi 0, %s150
      %s153 = sphi 0, %s152
      %s167 = sphi 0, %s153
      %s173 = sphi 0, %s175
      %s176 = sphi 0, %s173
      %s177 = sphi 0, %s176
      %s193 = sphi 0, %s177
    $region4: #{tpu_custom_call.1} parent=1 // loop_header_branch
      %21 = sbr.rel (%p19) target = $region8
    $region5: #{tpu_custom_call.1} parent=1 // loop_body
      %s23 = ssub.s32 %s18, 1
      %s24 = ssub.s32 %s18, 2
      %s31 = sadd.s32 1, %s26
      %p32 = scmp.ge.s32.totalorder %s31, 2
      %s33 = scalar_select %p32, 0, %s31
      %s34 = sadd.s32 1, %s25
      %s35 = scalar_select %p32, %s34, %s25
      %p36 = scmp.ge.s32.totalorder %s35, 1
      %s37 = scalar_select %p36, 0, %s35
      %s38 = ssub.s32 %s26, %s33
      %s39 = ssub.s32 %s25, %s37
      %s40 = sor.u32 %s38, %s39
      %p41 = scmp.eq.s32.totalorder %s40, 0
      %s43 = sadd.s32 %s42, 1
      %s44 = scalar_select %p41, %s42, %s43
      %p47 = pneg %p41
      %p48 = scmp.eq.s32.totalorder %s18, 1
      %p49 = por %p47, %p48
      %p50 = scmp.ne.s32.totalorder %s42, %s45
      %p51 = scmp.eq.s32.totalorder %s18, 0
      %p52 = por %p50, %p51
      %p53 = scmp.ne.s32.totalorder %s42, %s45
      %p54 = scmp.eq.s32.totalorder %s23, 1
      %p55 = por %p53, %p54
      %p56 = scmp.ne.s32.totalorder %s45, %s46
      %p57 = scmp.eq.s32.totalorder %s23, 0
      %p58 = por %p56, %p57
      %p59 = scmp.ne.s32.totalorder %s45, %s46
      %p60 = scmp.eq.s32.totalorder %s24, 1
      %p61 = por %p59, %p60
      %p63 = scmp.ne.s32.totalorder %s46, %s62
      %p64 = scmp.eq.s32.totalorder %s24, 0
      %p65 = por %p63, %p64
      %s67 = sadd.s32 %s66, 1
      %p70 = scmp.eq.s32.totalorder %s18, 1
      %p71 = scmp.ne.s32.totalorder %s66, %s68
      %p72 = scmp.eq.s32.totalorder %s18, 0
      %p73 = por %p71, %p72
      %p74 = scmp.ne.s32.totalorder %s66, %s68
      %p75 = scmp.eq.s32.totalorder %s23, 1
      %p76 = por %p74, %p75
      %p77 = scmp.ne.s32.totalorder %s68, %s69
      %p78 = scmp.eq.s32.totalorder %s23, 0
      %p79 = por %p77, %p78
      %p80 = scmp.ne.s32.totalorder %s68, %s69
      %p81 = scmp.eq.s32.totalorder %s24, 1
      %p82 = por %p80, %p81
      %p84 = scmp.ne.s32.totalorder %s69, %s83
      %p85 = scmp.eq.s32.totalorder %s24, 0
      %p86 = por %p84, %p85
      %s88 = sadd.s32 %s87, 1
      %p91 = scmp.eq.s32.totalorder %s18, 1
      %p92 = scmp.ne.s32.totalorder %s87, %s89
      %p93 = scmp.eq.s32.totalorder %s18, 0
      %p94 = por %p92, %p93
      %p95 = scmp.ne.s32.totalorder %s87, %s89
      %p96 = scmp.eq.s32.totalorder %s23, 1
      %p97 = por %p95, %p96
      %p98 = scmp.ne.s32.totalorder %s89, %s90
      %p99 = scmp.eq.s32.totalorder %s23, 0
      %p100 = por %p98, %p99
      %p101 = scmp.ne.s32.totalorder %s89, %s90
      %p102 = scmp.eq.s32.totalorder %s24, 1
      %p103 = por %p101, %p102
      %p105 = scmp.ne.s32.totalorder %s90, %s104
      %p106 = scmp.eq.s32.totalorder %s24, 0
      %p107 = por %p105, %p106
      %s109 = sadd.s32 %s108, 1
      %p112 = scmp.eq.s32.totalorder %s18, 1
      %p113 = scmp.ne.s32.totalorder %s108, %s110
      %p114 = scmp.eq.s32.totalorder %s18, 0
      %p115 = por %p113, %p114
      %p116 = scmp.ne.s32.totalorder %s108, %s110
      %p117 = scmp.eq.s32.totalorder %s23, 1
      %p118 = por %p116, %p117
      %p119 = scmp.ne.s32.totalorder %s110, %s111
      %p120 = scmp.eq.s32.totalorder %s23, 0
      %p121 = por %p119, %p120
      %p122 = scmp.ne.s32.totalorder %s110, %s111
      %p123 = scmp.eq.s32.totalorder %s24, 1
      %p124 = por %p122, %p123
      %p126 = scmp.ne.s32.totalorder %s111, %s125
      %p127 = scmp.eq.s32.totalorder %s24, 0
      %p128 = por %p126, %p127
      %s130 = sadd.s32 %s129, 1
      %p133 = scmp.eq.s32.totalorder %s18, 1
      %p134 = scmp.ne.s32.totalorder %s129, %s131
      %p135 = scmp.eq.s32.totalorder %s18, 0
      %p136 = por %p134, %p135
      %p137 = scmp.ne.s32.totalorder %s129, %s131
      %p138 = scmp.eq.s32.totalorder %s23, 1
      %p139 = por %p137, %p138
      %p140 = scmp.ne.s32.totalorder %s131, %s132
      %p141 = scmp.eq.s32.totalorder %s23, 0
      %p142 = por %p140, %p141
      %p143 = scmp.ne.s32.totalorder %s131, %s132
      %p144 = scmp.eq.s32.totalorder %s24, 1
      %p145 = por %p143, %p144
      %p147 = scmp.ne.s32.totalorder %s132, %s146
      %p148 = scmp.eq.s32.totalorder %s24, 0
      %p149 = por %p147, %p148
      %s151 = sadd.s32 %s150, 1
      %p154 = scmp.eq.s32.totalorder %s18, 1
      %p155 = scmp.ne.s32.totalorder %s150, %s152
      %p156 = scmp.eq.s32.totalorder %s18, 0
      %p157 = por %p155, %p156
      %p158 = scmp.ne.s32.totalorder %s150, %s152
      %p159 = scmp.eq.s32.totalorder %s23, 1
      %p160 = por %p158, %p159
      %p161 = scmp.ne.s32.totalorder %s152, %s153
      %p162 = scmp.eq.s32.totalorder %s23, 0
      %p163 = por %p161, %p162
      %p164 = scmp.ne.s32.totalorder %s152, %s153
      %p165 = scmp.eq.s32.totalorder %s24, 1
      %p166 = por %p164, %p165
      %p168 = scmp.ne.s32.totalorder %s153, %s167
      %p169 = scmp.eq.s32.totalorder %s24, 0
      %p170 = por %p168, %p169
      %s171 = ssub.s32 %s25, %s37
      %p172 = scmp.eq.s32.totalorder %s171, 0
      %s174 = sadd.s32 %s173, 1
      %s175 = scalar_select %p172, %s173, %s174
      %p178 = pneg %p172
      %p179 = scmp.eq.s32.totalorder %s18, 1
      %p180 = por %p178, %p179
      %p181 = scmp.ne.s32.totalorder %s173, %s176
      %p182 = scmp.eq.s32.totalorder %s18, 0
      %p183 = por %p181, %p182
      %p184 = scmp.ne.s32.totalorder %s173, %s176
      %p185 = scmp.eq.s32.totalorder %s23, 1
      %p186 = por %p184, %p185
      %p187 = scmp.ne.s32.totalorder %s176, %s177
      %p188 = scmp.eq.s32.totalorder %s23, 0
      %p189 = por %p187, %p188
      %p190 = scmp.ne.s32.totalorder %s176, %s177
      %p191 = scmp.eq.s32.totalorder %s24, 1
      %p192 = por %p190, %p191
      %p194 = scmp.ne.s32.totalorder %s177, %s193
      %p195 = scmp.eq.s32.totalorder %s24, 0
      %p196 = por %p194, %p195
      %p197 = scmp.le.s32.totalorder 1, %s18
      %p198 = scmp.lt.s32.totalorder %s18, 3
      %p199 = pnand %p197, %p198
      %p200 = pneg %p199
      // Predicated region
      $region9: #{tpu_custom_call.1} parent=5 // pred_check
        _
      $region10: #{tpu_custom_call.1} parent=5 // pred_check_branch
        %202 = sbr.rel (%p199) target = $region12
      $region11: #{tpu_custom_call.1} parent=5 // pred_region
        %s203 = ssub.s32 %s18, 1
        // Predicated region
        $region13: #{tpu_custom_call.1} parent=11 // pred_check
          %p204 = pneg %p79
        $region14: #{tpu_custom_call.1} parent=11 // pred_check_branch
          %206 = sbr.rel (%p204) target = $region16
        $region15: #{tpu_custom_call.1} parent=11 // pred_region
          %s208 = ssub.s32 256, 256
          %209 = vsyncadd [#allocation8], %s208
          %s210 = sshll.u32 [#allocation7], 4
          %s211 = int_to_ptr.vmem [resolvable:$true] %s210
          %216 = dma.hbm_to_vmem [thread:$0]  %s1, 256, %s211, [#allocation8], 128, 128, 8
        $region16: #{tpu_custom_call.1} parent=11 // pred_fallthru
          _
        // Predicated region
        $region17: #{tpu_custom_call.1} parent=11 // pred_check
          %p217 = pneg %p100
        $region18: #{tpu_custom_call.1} parent=11 // pred_check_branch
          %219 = sbr.rel (%p217) target = $region20
        $region19: #{tpu_custom_call.1} parent=11 // pred_region
          _
        $region20: #{tpu_custom_call.1} parent=11 // pred_fallthru
          _
        // Predicated region
        $region21: #{tpu_custom_call.1} parent=11 // pred_check
          %p220 = pneg %p121
        $region22: #{tpu_custom_call.1} parent=11 // pred_check_branch
          %222 = sbr.rel (%p220) target = $region24
        $region23: #{tpu_custom_call.1} parent=11 // pred_region
          %s224 = ssub.s32 2048, 2048
          %225 = vsyncadd [#allocation8], %s224
          %s226 = sshll.u32 [#allocation9], 4
          %s227 = int_to_ptr.vmem [resolvable:$true] %s226
          %232 = dma.hbm_to_vmem [thread:$0]  %s3, 2048, %s227, [#allocation8], 128, 128, 8
        $region24: #{tpu_custom_call.1} parent=11 // pred_fallthru
          _
        // Predicated region
        $region25: #{tpu_custom_call.1} parent=11 // pred_check
          %p233 = pneg %p142
        $region26: #{tpu_custom_call.1} parent=11 // pred_check_branch
          %235 = sbr.rel (%p233) target = $region28
        $region27: #{tpu_custom_call.1} parent=11 // pred_region
          _
        $region28: #{tpu_custom_call.1} parent=11 // pred_fallthru
          _
        // Predicated region
        $region29: #{tpu_custom_call.1} parent=11 // pred_check
          %p236 = pneg %p163
        $region30: #{tpu_custom_call.1} parent=11 // pred_check_branch
          %238 = sbr.rel (%p236) target = $region32
        $region31: #{tpu_custom_call.1} parent=11 // pred_region
          _
        $region32: #{tpu_custom_call.1} parent=11 // pred_fallthru
          _
      $region12: #{tpu_custom_call.1} parent=5 // pred_fallthru
        _
      %p239 = scmp.lt.s32.totalorder %s18, 2
      // Predicated region
      $region33: #{tpu_custom_call.1} parent=5 // pred_check
        %p240 = pneg %p239
      $region34: #{tpu_custom_call.1} parent=5 // pred_check_branch
        %242 = sbr.rel (%p240) target = $region36
      $region35: #{tpu_custom_call.1} parent=5 // pred_region
        // Predicated region
        $region37: #{tpu_custom_call.1} parent=35 // pred_check
          %p243 = pneg %p52
        $region38: #{tpu_custom_call.1} parent=35 // pred_check_branch
          %245 = sbr.rel (%p243) target = $region40
        $region39: #{tpu_custom_call.1} parent=35 // pred_region
          %s246 = sand.u32 %s42, 1
          %s247 = scalar_lea.sflag [#allocation6], %s246
          %s248 = sand.u32 %s42, 1
          %s249 = smul.addr %s248, 32
          %s250 = scalar_lea.vmem [#allocation5], %s249
          %s251 = smul.u32 4, %s26
          %s252 = smul.u32 2, %s25
          %s254 = ssub.s32 512, 512
          %255 = vsyncadd %s247, %s254
          %s256 = smul.addr %s251, 2
          %s257 = sadd.s32 %s252, %s256
          %s258 = smul.addr %s257, 64
          %s259 = scalar_lea.hbm %s0, %s258
          %s260 = sshll.u32 %s250, 4
          %s261 = int_to_ptr.vmem [resolvable:$true] %s260
          %266 = dma.hbm_to_vmem [thread:$0]  %s259, 512, %s261, %s247, 64, 64, 4
        $region40: #{tpu_custom_call.1} parent=35 // pred_fallthru
          _
      $region36: #{tpu_custom_call.1} parent=5 // pred_fallthru
        _
      %p267 = scmp.le.s32.totalorder 1, %s18
      %p268 = scmp.lt.s32.totalorder %s18, 3
      %p269 = pnand %p267, %p268
      %p270 = pneg %p269
      // Predicated region
      $region41: #{tpu_custom_call.1} parent=5 // pred_check
        _
      $region42: #{tpu_custom_call.1} parent=5 // pred_check_branch
        %272 = sbr.rel (%p269) target = $region44
      $region43: #{tpu_custom_call.1} parent=5 // pred_region
        %s273 = ssub.s32 %s18, 1
        %s274 = sand.u32 %s45, 1
        %s275 = scalar_lea.sflag [#allocation6], %s274
        %s276 = sand.u32 %s45, 1
        %s277 = smul.addr %s276, 32
        %s278 = scalar_lea.vmem [#allocation5], %s277
        // Predicated region
        $region45: #{tpu_custom_call.1} parent=43 // pred_check
          %p279 = pneg %p58
        $region46: #{tpu_custom_call.1} parent=43 // pred_check_branch
          %281 = sbr.rel (%p279) target = $region48
        $region47: #{tpu_custom_call.1} parent=43 // pred_region
          %282 = dma.done %s275, 512
        $region48: #{tpu_custom_call.1} parent=43 // pred_fallthru
          _
        // Predicated region
        $region49: #{tpu_custom_call.1} parent=43 // pred_check
          %p283 = pneg %p79
        $region50: #{tpu_custom_call.1} parent=43 // pred_check_branch
          %285 = sbr.rel (%p283) target = $region52
        $region51: #{tpu_custom_call.1} parent=43 // pred_region
          %286 = dma.done [#allocation8], 256
        $region52: #{tpu_custom_call.1} parent=43 // pred_fallthru
          _
        // Predicated region
        $region53: #{tpu_custom_call.1} parent=43 // pred_check
          %p287 = pneg %p121
        $region54: #{tpu_custom_call.1} parent=43 // pred_check_branch
          %289 = sbr.rel (%p287) target = $region56
        $region55: #{tpu_custom_call.1} parent=43 // pred_region
          %290 = dma.done [#allocation8], 2048
        $region56: #{tpu_custom_call.1} parent=43 // pred_fallthru
          _
        %s291 = sand.u32 %s45, 1
        %s292 = scalar_lea.sflag [#allocation6], %s291
        %s293 = sand.u32 %s45, 1
        %s294 = smul.addr %s293, 32
        %s295 = scalar_lea.vmem [#allocation5], %s294
        %p296 = pneg %p58
        %p297 = pneg %p55
        %p298 = pneg %p79
        %p299 = pneg %p76
        %p300 = pneg %p100
        %p301 = pneg %p97
        %p302 = pneg %p121
        %p303 = pneg %p118
        %p304 = pneg %p142
        %p305 = pneg %p139
        %p306 = pneg %p163
        %p307 = pneg %p160
        %p308 = pneg %p189
        %p309 = pneg %p186
        %s310 = smul.u32 2, %s27
        %p311 = scmp.lt.s32.totalorder %s310, 1
        %s312 = scalar_select %p311, %s310, 1
        %s313 = smul.addr %s312, 8
        %s314 = scalar_lea.vmem %s6, %s313
        %s315 = smul.u32 4, %s28
        %s316 = smul.u32 2, %s27
        %s317 = smul.u32 2, %s27
        %p318 = scmp.lt.s32.totalorder %s317, 1
        %s319 = scalar_select %p318, %s317, 1
        %s320 = smul.addr %s319, 8
        %s321 = scalar_lea.vmem %s6, %s320
        %s322 = smul.u32 2, %s27
        %p324 = scmp.eq.s32.totalorder %s28, 0
        // Predicated region
        $region57: #{tpu_custom_call.1} parent=43 // pred_check
          %p325 = pneg %p324
        $region58: #{tpu_custom_call.1} parent=43 // pred_check_branch
          %327 = sbr.rel (%p325) target = $region60
        $region59: #{tpu_custom_call.1} parent=43 // pred_region
          %328 = vst [vmem:[#allocation2] sm:$0xff] 0.0
          %329 = vst [vmem:[#allocation2 + $0x8] sm:$0xff] 0.0
        $region60: #{tpu_custom_call.1} parent=43 // pred_fallthru
          _
        %v330 = vld [vmem:[%s278] sm:$0xf]
        %v331 = vld [vmem:[%s278 + $0x4] sm:$0xf]
        %v332 = vld [vmem:[%s278 + $0x8] sm:$0xf]
        %v333 = vld [vmem:[%s278 + $0xc] sm:$0xf]
        %v334 = vld [vmem:[%s278 + $0x10] sm:$0xf]
        %v335 = vld [vmem:[%s278 + $0x14] sm:$0xf]
        %v336 = vld [vmem:[%s278 + $0x18] sm:$0xf]
        %v337 = vld [vmem:[%s278 + $0x1c] sm:$0xf]
        %v338 = vld [vmem:[#allocation7] sm:$0xff]
        %v339 = vld [vmem:[#allocation7 + $0x8] sm:$0xff]
        %v340 = vld [vmem:[%s2] sm:$0x3]
        %v342 = vlaneseq
        %v343 = vshrl.u32 %v342, 7
        %v344 = vsub.s32 0, %v343
        %v345 = vrot.slane %v340, %v344
        %v346 = vlaneseq
        %v347 = vshrl.u32 %v346, 7
        %v348 = vsub.s32 1, %v347
        %v349 = vrot.slane %v340, %v348
        %v360 = vunpack.c.l.b16 %v330
        %v361 = vunpack.c.l.b16 %v331
        %v362 = vunpack.c.l.b16 %v332
        %v363 = vunpack.c.l.b16 %v333
        %v364 = vunpack.c.l.b16 %v334
        %v365 = vunpack.c.l.b16 %v335
        %v366 = vunpack.c.l.b16 %v336
        %v367 = vunpack.c.l.b16 %v337
        %v368 = vpack.c.b16 %v361, %v360
        %v369 = vpack.c.b16 %v363, %v362
        %v370 = vpack.c.b16 %v365, %v364
        %v371 = vpack.c.b16 %v367, %v366
        %v374 = vunpack.c.l.b16 %v338
        %v375 = vunpack.c.h.b16 %v338
        %v376 = vunpack.c.l.b16 %v339
        %v377 = vunpack.c.h.b16 %v339
        %v378 = vpack.c.b16 %v376, %v374
        %v379 = vpack.c.b16 %v377, %v375
        %vm382 = vcmask 130048
        %v384 = vsel %vm382, %v368, 0
        %v387 = vsel %vm382, %v369, 0
        %v390 = vsel %vm382, %v370, 0
        %v393 = vsel %vm382, %v371, 0
        %395 = vmatprep.subr.bf16.mxu0 %v379
        %396 = vmatpush1.bf16.msra.mxu0 %v378
        %397 = vmatprep.subr.bf16.mxu0 0
        %398 = vmatpush1.bf16.msra.mxu0 0
        %399 = vmatprep.subr.bf16.mxu0 0
        %400 = vmatpush1.bf16.msra.mxu0 0
        %401 = vmatprep.subr.bf16.mxu0 0
        %402 = vmatpush1.bf16.msra.mxu0 0
        %403 = vmatprep.subr.bf16.mxu0 0
        %404 = vmatpush1.bf16.msra.mxu0 0
        %405 = vmatprep.subr.bf16.mxu0 0
        %406 = vmatpush1.bf16.msra.mxu0 0
        %407 = vmatprep.subr.bf16.mxu0 0
        %408 = vmatpush1.bf16.msra.mxu0 0
        %409 = vmatprep.subr.bf16.mxu0 0
        %410 = vmatpush1.bf16.msra.mxu0 0
        %411 = vmatprep.subr.bf16.mxu0 0
        %412 = vmatpush1.bf16.msra.mxu0 0
        %413 = vmatprep.subr.bf16.mxu0 0
        %414 = vmatpush1.bf16.msra.mxu0 0
        %415 = vmatprep.subr.bf16.mxu0 0
        %416 = vmatpush1.bf16.msra.mxu0 0
        %417 = vmatprep.subr.bf16.mxu0 0
        %418 = vmatpush1.bf16.msra.mxu0 0
        %419 = vmatprep.subr.bf16.mxu0 0
        %420 = vmatpush1.bf16.msra.mxu0 0
        %421 = vmatprep.subr.bf16.mxu0 0
        %422 = vmatpush1.bf16.msra.mxu0 0
        %423 = vmatprep.subr.bf16.mxu0 0
        %424 = vmatpush1.bf16.msra.mxu0 0
        %425 = vmatprep.subr.bf16.mxu0 0
        %426 = vmatpush1.bf16.msra.mxu0 0
        %427 = vmatprep.mubr.bf16.mxu0 0
        %428 = vmatmul.mubr.bf16.gmra.mrb[0].mxu0 %v384
        %v429 = vpop.f32.mrb[0].mxu0
        %v430 = vadd.f32 %v345, %v429
        %v431 = vpop.f32.mrb[0].mxu0
        %v432 = vadd.f32 %v349, %v431
        %v433 = vpop.f32.mrb[0].mxu0
        %v434 = vadd.f32 %v345, %v433
        %v435 = vpop.f32.mrb[0].mxu0
        %v436 = vadd.f32 %v349, %v435
        %437 = vmatprep.mubr.bf16.mxu0 0
        %438 = vmatmul.mubr.bf16.gmra.mrb[0].mxu0 %v387
        %v439 = vpop.f32.mrb[0].mxu0
        %v440 = vadd.f32 %v345, %v439
        %v441 = vpop.f32.mrb[0].mxu0
        %v442 = vadd.f32 %v349, %v441
        %v443 = vpop.f32.mrb[0].mxu0
        %v444 = vadd.f32 %v345, %v443
        %v445 = vpop.f32.mrb[0].mxu0
        %v446 = vadd.f32 %v349, %v445
        %447 = vmatprep.mubr.bf16.mxu0 0
        %448 = vmatmul.mubr.bf16.gmra.mrb[0].mxu0 %v390
        %v449 = vpop.f32.mrb[0].mxu0
        %v450 = vadd.f32 %v345, %v449
        %v451 = vpop.f32.mrb[0].mxu0
        %v452 = vadd.f32 %v349, %v451
        %v453 = vpop.f32.mrb[0].mxu0
        %v454 = vadd.f32 %v345, %v453
        %v455 = vpop.f32.mrb[0].mxu0
        %v456 = vadd.f32 %v349, %v455
        %457 = vmatprep.mubr.bf16.mxu0 0
        %458 = vmatmul.mubr.bf16.gmra.mrb[0].mxu0 %v393
        %v459 = vpop.f32.mrb[0].mxu0
        %v460 = vadd.f32 %v345, %v459
        %v461 = vpop.f32.mrb[0].mxu0
        %v462 = vadd.f32 %v349, %v461
        %v463 = vpop.f32.mrb[0].mxu0
        %v464 = vadd.f32 %v345, %v463
        %v465 = vpop.f32.mrb[0].mxu0
        %v466 = vadd.f32 %v349, %v465
        %467 = vdwg.mxu0
        %468 = vst [vmem:[#allocation3] sm:$0xff] %v430
        %469 = vst [vmem:[#allocation3 + $0x8] sm:$0xff] %v432
        %470 = vst [vmem:[#allocation3 + $0x10] sm:$0xff] %v434
        %471 = vst [vmem:[#allocation3 + $0x18] sm:$0xff] %v436
        %472 = vst [vmem:[#allocation3 + $0x20] sm:$0xff] %v440
        %473 = vst [vmem:[#allocation3 + $0x28] sm:$0xff] %v442
        %474 = vst [vmem:[#allocation3 + $0x30] sm:$0xff] %v444
        %475 = vst [vmem:[#allocation3 + $0x38] sm:$0xff] %v446
        %476 = vst [vmem:[#allocation3 + $0x40] sm:$0xff] %v450
        %477 = vst [vmem:[#allocation3 + $0x48] sm:$0xff] %v452
        %478 = vst [vmem:[#allocation3 + $0x50] sm:$0xff] %v454
        %479 = vst [vmem:[#allocation3 + $0x58] sm:$0xff] %v456
        %480 = vst [vmem:[#allocation3 + $0x60] sm:$0xff] %v460
        %481 = vst [vmem:[#allocation3 + $0x68] sm:$0xff] %v462
        %482 = vst [vmem:[#allocation3 + $0x70] sm:$0xff] %v464
        %483 = vst [vmem:[#allocation3 + $0x78] sm:$0xff] %v466
        %v484 = vld [vmem:[#allocation9] sm:$0xff]
        %v485 = vld [vmem:[#allocation9 + $0x8] sm:$0xff]
        %v486 = vld [vmem:[#allocation9 + $0x10] sm:$0xff]
        %v487 = vld [vmem:[#allocation9 + $0x18] sm:$0xff]
        %v488 = vld [vmem:[#allocation9 + $0x20] sm:$0xff]
        %v489 = vld [vmem:[#allocation9 + $0x28] sm:$0xff]
        %v490 = vld [vmem:[#allocation9 + $0x30] sm:$0xff]
        %v491 = vld [vmem:[#allocation9 + $0x38] sm:$0xff]
        %v492 = vld [vmem:[#allocation9 + $0x40] sm:$0xff]
        %v493 = vld [vmem:[#allocation9 + $0x48] sm:$0xff]
        %v494 = vld [vmem:[#allocation9 + $0x50] sm:$0xff]
        %v495 = vld [vmem:[#allocation9 + $0x58] sm:$0xff]
        %v496 = vld [vmem:[#allocation9 + $0x60] sm:$0xff]
        %v497 = vld [vmem:[#allocation9 + $0x68] sm:$0xff]
        %v498 = vld [vmem:[#allocation9 + $0x70] sm:$0xff]
        %v499 = vld [vmem:[#allocation9 + $0x78] sm:$0xff]
        %v500 = vld [vmem:[#allocation2] sm:$0xff]
        %v501 = vld [vmem:[#allocation2 + $0x8] sm:$0xff]
        %v502 = vld [vmem:[#allocation3] sm:$0xff]
        %v503 = vld [vmem:[#allocation3 + $0x8] sm:$0xff]
        %v504 = vld [vmem:[#allocation3 + $0x10] sm:$0xff]
        %v505 = vld [vmem:[#allocation3 + $0x18] sm:$0xff]
        %v506 = vpack.c.bf16 %v500, %v500
        %v523 = vunpack.c.l.b16 %v484
        %v524 = vunpack.c.h.b16 %v484
        %v525 = vunpack.c.l.b16 %v485
        %v526 = vunpack.c.h.b16 %v485
        %v527 = vunpack.c.l.b16 %v486
        %v528 = vunpack.c.h.b16 %v486
        %v529 = vunpack.c.l.b16 %v487
        %v530 = vunpack.c.h.b16 %v487
        %v531 = vunpack.c.l.b16 %v488
        %v532 = vunpack.c.h.b16 %v488
        %v533 = vunpack.c.l.b16 %v489
        %v534 = vunpack.c.h.b16 %v489
        %v535 = vunpack.c.l.b16 %v490
        %v536 = vunpack.c.h.b16 %v490
        %v537 = vunpack.c.l.b16 %v491
        %v538 = vunpack.c.h.b16 %v491
        %v539 = vunpack.c.l.b16 %v492
        %v540 = vunpack.c.h.b16 %v492
        %v541 = vunpack.c.l.b16 %v493
        %v542 = vunpack.c.h.b16 %v493
        %v543 = vunpack.c.l.b16 %v494
        %v544 = vunpack.c.h.b16 %v494
        %v545 = vunpack.c.l.b16 %v495
        %v546 = vunpack.c.h.b16 %v495
        %v547 = vunpack.c.l.b16 %v496
        %v548 = vunpack.c.h.b16 %v496
        %v549 = vunpack.c.l.b16 %v497
        %v550 = vunpack.c.h.b16 %v497
        %v551 = vunpack.c.l.b16 %v498
        %v552 = vunpack.c.h.b16 %v498
        %v553 = vunpack.c.l.b16 %v499
        %v554 = vunpack.c.h.b16 %v499
        %v555 = vpack.c.b16 %v525, %v523
        %v556 = vpack.c.b16 %v526, %v524
        %v557 = vpack.c.b16 %v529, %v527
        %v558 = vpack.c.b16 %v530, %v528
        %v559 = vpack.c.b16 %v533, %v531
        %v560 = vpack.c.b16 %v534, %v532
        %v561 = vpack.c.b16 %v537, %v535
        %v562 = vpack.c.b16 %v538, %v536
        %v563 = vpack.c.b16 %v541, %v539
        %v564 = vpack.c.b16 %v542, %v540
        %v565 = vpack.c.b16 %v545, %v543
        %v566 = vpack.c.b16 %v546, %v544
        %v567 = vpack.c.b16 %v549, %v547
        %v568 = vpack.c.b16 %v550, %v548
        %v569 = vpack.c.b16 %v553, %v551
        %v570 = vpack.c.b16 %v554, %v552
        %587 = vmatprep.subr.bf16.mxu0 %v556
        %588 = vmatpush1.bf16.msra.mxu0 %v555
        %589 = vmatprep.subr.bf16.mxu0 %v558
        %590 = vmatpush1.bf16.msra.mxu0 %v557
        %591 = vmatprep.subr.bf16.mxu0 %v560
        %592 = vmatpush1.bf16.msra.mxu0 %v559
        %593 = vmatprep.subr.bf16.mxu0 %v562
        %594 = vmatpush1.bf16.msra.mxu0 %v561
        %595 = vmatprep.subr.bf16.mxu0 %v564
        %596 = vmatpush1.bf16.msra.mxu0 %v563
        %597 = vmatprep.subr.bf16.mxu0 %v566
        %598 = vmatpush1.bf16.msra.mxu0 %v565
        %599 = vmatprep.subr.bf16.mxu0 %v568
        %600 = vmatpush1.bf16.msra.mxu0 %v567
        %601 = vmatprep.subr.bf16.mxu0 %v570
        %602 = vmatpush1.bf16.msra.mxu0 %v569
        %603 = vmatprep.subr.bf16.mxu0 0
        %604 = vmatpush1.bf16.msra.mxu0 0
        %605 = vmatprep.subr.bf16.mxu0 0
        %606 = vmatpush1.bf16.msra.mxu0 0
        %607 = vmatprep.subr.bf16.mxu0 0
        %608 = vmatpush1.bf16.msra.mxu0 0
        %609 = vmatprep.subr.bf16.mxu0 0
        %610 = vmatpush1.bf16.msra.mxu0 0
        %611 = vmatprep.subr.bf16.mxu0 0
        %612 = vmatpush1.bf16.msra.mxu0 0
        %613 = vmatprep.subr.bf16.mxu0 0
        %614 = vmatpush1.bf16.msra.mxu0 0
        %615 = vmatprep.subr.bf16.mxu0 0
        %616 = vmatpush1.bf16.msra.mxu0 0
        %617 = vmatprep.subr.bf16.mxu0 0
        %618 = vmatpush1.bf16.msra.mxu0 0
        %619 = vmatprep.mubr.bf16.mxu0 0
        %620 = vmatmul.mubr.bf16.gmra.mrb[0].mxu0 %v506
        %v621 = vpop.f32.mrb[0].mxu0
        %v622 = vadd.f32 0.0, %v621
        %v623 = vpop.f32.mrb[0].mxu0
        %v624 = vadd.f32 0.0, %v623
        %v625 = vpop.f32.mrb[0].mxu0
        %v626 = vpop.f32.mrb[0].mxu0
        %627 = vdwg.mxu0
        %v628 = vadd.f32 %v502, %v622
        %v629 = vadd.f32 %v503, %v624
        %v630 = vxor.u32 %v628, 2147483648
        %v631 = vmul.f32 %v630, 1.442695
        %v632 = vpow.pop %v631
        %v633 = vadd.f32 %v632, 1.0
        %v634 = vrcp.pop %v633
        %v635 = vmul.f32 1.0, %v634
        %v636 = vtanh.pop %v629
        %v637 = vsub.f32 %v636, %v500
        %v638 = vmul.f32 %v635, %v637
        %v639 = vadd.f32 %v500, %v638
        %v640 = vpack.c.bf16 %v501, %v501
        %641 = vmatprep.subr.bf16.mxu0 %v556
        %642 = vmatpush1.bf16.msra.mxu0 %v555
        %643 = vmatprep.subr.bf16.mxu0 %v558
        %644 = vmatpush1.bf16.msra.mxu0 %v557
        %645 = vmatprep.subr.bf16.mxu0 %v560
        %646 = vmatpush1.bf16.msra.mxu0 %v559
        %647 = vmatprep.subr.bf16.mxu0 %v562
        %648 = vmatpush1.bf16.msra.mxu0 %v561
        %649 = vmatprep.subr.bf16.mxu0 %v564
        %650 = vmatpush1.bf16.msra.mxu0 %v563
        %651 = vmatprep.subr.bf16.mxu0 %v566
        %652 = vmatpush1.bf16.msra.mxu0 %v565
        %653 = vmatprep.subr.bf16.mxu0 %v568
        %654 = vmatpush1.bf16.msra.mxu0 %v567
        %655 = vmatprep.subr.bf16.mxu0 %v570
        %656 = vmatpush1.bf16.msra.mxu0 %v569
        %657 = vmatprep.subr.bf16.mxu0 0
        %658 = vmatpush1.bf16.msra.mxu0 0
        %659 = vmatprep.subr.bf16.mxu0 0
        %660 = vmatpush1.bf16.msra.mxu0 0
        %661 = vmatprep.subr.bf16.mxu0 0
        %662 = vmatpush1.bf16.msra.mxu0 0
        %663 = vmatprep.subr.bf16.mxu0 0
        %664 = vmatpush1.bf16.msra.mxu0 0
        %665 = vmatprep.subr.bf16.mxu0 0
        %666 = vmatpush1.bf16.msra.mxu0 0
        %667 = vmatprep.subr.bf16.mxu0 0
        %668 = vmatpush1.bf16.msra.mxu0 0
        %669 = vmatprep.subr.bf16.mxu0 0
        %670 = vmatpush1.bf16.msra.mxu0 0
        %671 = vmatprep.subr.bf16.mxu0 0
        %672 = vmatpush1.bf16.msra.mxu0 0
        %673 = vmatprep.mubr.bf16.mxu0 0
        %674 = vmatmul.mubr.bf16.gmra.mrb[0].mxu0 %v640
        %v675 = vpop.f32.mrb[0].mxu0
        %v676 = vadd.f32 0.0, %v675
        %v677 = vpop.f32.mrb[0].mxu0
        %v678 = vadd.f32 0.0, %v677
        %v679 = vpop.f32.mrb[0].mxu0
        %v680 = vpop.f32.mrb[0].mxu0
        %681 = vdwg.mxu0
        %v682 = vadd.f32 %v504, %v676
        %v683 = vadd.f32 %v505, %v678
        %v684 = vxor.u32 %v682, 2147483648
        %v685 = vmul.f32 %v684, 1.442695
        %v686 = vpow.pop %v685
        %v687 = vadd.f32 %v686, 1.0
        %v688 = vrcp.pop %v687
        %v689 = vmul.f32 1.0, %v688
        %v690 = vtanh.pop %v683
        %v691 = vsub.f32 %v690, %v501
        %v692 = vmul.f32 %v689, %v691
        %v693 = vadd.f32 %v501, %v692
        %s694 = scalar_lea.vmem [#allocation3], 32
        %v695 = vld [vmem:[%s694] sm:$0xff]
        %v696 = vld [vmem:[%s694 + $0x8] sm:$0xff]
        %v697 = vld [vmem:[%s694 + $0x10] sm:$0xff]
        %v698 = vld [vmem:[%s694 + $0x18] sm:$0xff]
        %v699 = vpack.c.bf16 %v639, %v639
        %700 = vmatprep.subr.bf16.mxu0 %v556
        %701 = vmatpush1.bf16.msra.mxu0 %v555
        %702 = vmatprep.subr.bf16.mxu0 %v558
        %703 = vmatpush1.bf16.msra.mxu0 %v557
        %704 = vmatprep.subr.bf16.mxu0 %v560
        %705 = vmatpush1.bf16.msra.mxu0 %v559
        %706 = vmatprep.subr.bf16.mxu0 %v562
        %707 = vmatpush1.bf16.msra.mxu0 %v561
        %708 = vmatprep.subr.bf16.mxu0 %v564
        %709 = vmatpush1.bf16.msra.mxu0 %v563
        %710 = vmatprep.subr.bf16.mxu0 %v566
        %711 = vmatpush1.bf16.msra.mxu0 %v565
        %712 = vmatprep.subr.bf16.mxu0 %v568
        %713 = vmatpush1.bf16.msra.mxu0 %v567
        %714 = vmatprep.subr.bf16.mxu0 %v570
        %715 = vmatpush1.bf16.msra.mxu0 %v569
        %716 = vmatprep.subr.bf16.mxu0 0
        %717 = vmatpush1.bf16.msra.mxu0 0
        %718 = vmatprep.subr.bf16.mxu0 0
        %719 = vmatpush1.bf16.msra.mxu0 0
        %720 = vmatprep.subr.bf16.mxu0 0
        %721 = vmatpush1.bf16.msra.mxu0 0
        %722 = vmatprep.subr.bf16.mxu0 0
        %723 = vmatpush1.bf16.msra.mxu0 0
        %724 = vmatprep.subr.bf16.mxu0 0
        %725 = vmatpush1.bf16.msra.mxu0 0
        %726 = vmatprep.subr.bf16.mxu0 0
        %727 = vmatpush1.bf16.msra.mxu0 0
        %728 = vmatprep.subr.bf16.mxu0 0
        %729 = vmatpush1.bf16.msra.mxu0 0
        %730 = vmatprep.subr.bf16.mxu0 0
        %731 = vmatpush1.bf16.msra.mxu0 0
        %732 = vmatprep.mubr.bf16.mxu0 0
        %733 = vmatmul.mubr.bf16.gmra.mrb[0].mxu0 %v699
        %v734 = vpop.f32.mrb[0].mxu0
        %v735 = vadd.f32 0.0, %v734
        %v736 = vpop.f32.mrb[0].mxu0
        %v737 = vadd.f32 0.0, %v736
        %v738 = vpop.f32.mrb[0].mxu0
        %v739 = vpop.f32.mrb[0].mxu0
        %740 = vdwg.mxu0
        %v741 = vadd.f32 %v695, %v735
        %v742 = vadd.f32 %v696, %v737
        %v743 = vxor.u32 %v741, 2147483648
        %v744 = vmul.f32 %v743, 1.442695
        %v745 = vpow.pop %v744
        %v746 = vadd.f32 %v745, 1.0
        %v747 = vrcp.pop %v746
        %v748 = vmul.f32 1.0, %v747
        %v749 = vtanh.pop %v742
        %v750 = vsub.f32 %v749, %v639
        %v751 = vmul.f32 %v748, %v750
        %v752 = vadd.f32 %v639, %v751
        %v753 = vpack.c.bf16 %v693, %v693
        %754 = vmatprep.subr.bf16.mxu0 %v556
        %755 = vmatpush1.bf16.msra.mxu0 %v555
        %756 = vmatprep.subr.bf16.mxu0 %v558
        %757 = vmatpush1.bf16.msra.mxu0 %v557
        %758 = vmatprep.subr.bf16.mxu0 %v560
        %759 = vmatpush1.bf16.msra.mxu0 %v559
        %760 = vmatprep.subr.bf16.mxu0 %v562
        %761 = vmatpush1.bf16.msra.mxu0 %v561
        %762 = vmatprep.subr.bf16.mxu0 %v564
        %763 = vmatpush1.bf16.msra.mxu0 %v563
        %764 = vmatprep.subr.bf16.mxu0 %v566
        %765 = vmatpush1.bf16.msra.mxu0 %v565
        %766 = vmatprep.subr.bf16.mxu0 %v568
        %767 = vmatpush1.bf16.msra.mxu0 %v567
        %768 = vmatprep.subr.bf16.mxu0 %v570
        %769 = vmatpush1.bf16.msra.mxu0 %v569
        %770 = vmatprep.subr.bf16.mxu0 0
        %771 = vmatpush1.bf16.msra.mxu0 0
        %772 = vmatprep.subr.bf16.mxu0 0
        %773 = vmatpush1.bf16.msra.mxu0 0
        %774 = vmatprep.subr.bf16.mxu0 0
        %775 = vmatpush1.bf16.msra.mxu0 0
        %776 = vmatprep.subr.bf16.mxu0 0
        %777 = vmatpush1.bf16.msra.mxu0 0
        %778 = vmatprep.subr.bf16.mxu0 0
        %779 = vmatpush1.bf16.msra.mxu0 0
        %780 = vmatprep.subr.bf16.mxu0 0
        %781 = vmatpush1.bf16.msra.mxu0 0
        %782 = vmatprep.subr.bf16.mxu0 0
        %783 = vmatpush1.bf16.msra.mxu0 0
        %784 = vmatprep.subr.bf16.mxu0 0
        %785 = vmatpush1.bf16.msra.mxu0 0
        %786 = vmatprep.mubr.bf16.mxu0 0
        %787 = vmatmul.mubr.bf16.gmra.mrb[0].mxu0 %v753
        %v788 = vpop.f32.mrb[0].mxu0
        %v789 = vadd.f32 0.0, %v788
        %v790 = vpop.f32.mrb[0].mxu0
        %v791 = vadd.f32 0.0, %v790
        %v792 = vpop.f32.mrb[0].mxu0
        %v793 = vpop.f32.mrb[0].mxu0
        %794 = vdwg.mxu0
        %v795 = vadd.f32 %v697, %v789
        %v796 = vadd.f32 %v698, %v791
        %v797 = vxor.u32 %v795, 2147483648
        %v798 = vmul.f32 %v797, 1.442695
        %v799 = vpow.pop %v798
        %v800 = vadd.f32 %v799, 1.0
        %v801 = vrcp.pop %v800
        %v802 = vmul.f32 1.0, %v801
        %v803 = vtanh.pop %v796
        %v804 = vsub.f32 %v803, %v693
        %v805 = vmul.f32 %v802, %v804
        %v806 = vadd.f32 %v693, %v805
        %s807 = scalar_lea.vmem [#allocation3], 64
        %v808 = vld [vmem:[%s807] sm:$0xff]
        %v809 = vld [vmem:[%s807 + $0x8] sm:$0xff]
        %v810 = vld [vmem:[%s807 + $0x10] sm:$0xff]
        %v811 = vld [vmem:[%s807 + $0x18] sm:$0xff]
        %v812 = vpack.c.bf16 %v752, %v752
        %813 = vmatprep.subr.bf16.mxu0 %v556
        %814 = vmatpush1.bf16.msra.mxu0 %v555
        %815 = vmatprep.subr.bf16.mxu0 %v558
        %816 = vmatpush1.bf16.msra.mxu0 %v557
        %817 = vmatprep.subr.bf16.mxu0 %v560
        %818 = vmatpush1.bf16.msra.mxu0 %v559
        %819 = vmatprep.subr.bf16.mxu0 %v562
        %820 = vmatpush1.bf16.msra.mxu0 %v561
        %821 = vmatprep.subr.bf16.mxu0 %v564
        %822 = vmatpush1.bf16.msra.mxu0 %v563
        %823 = vmatprep.subr.bf16.mxu0 %v566
        %824 = vmatpush1.bf16.msra.mxu0 %v565
        %825 = vmatprep.subr.bf16.mxu0 %v568
        %826 = vmatpush1.bf16.msra.mxu0 %v567
        %827 = vmatprep.subr.bf16.mxu0 %v570
        %828 = vmatpush1.bf16.msra.mxu0 %v569
        %829 = vmatprep.subr.bf16.mxu0 0
        %830 = vmatpush1.bf16.msra.mxu0 0
        %831 = vmatprep.subr.bf16.mxu0 0
        %832 = vmatpush1.bf16.msra.mxu0 0
        %833 = vmatprep.subr.bf16.mxu0 0
        %834 = vmatpush1.bf16.msra.mxu0 0
        %835 = vmatprep.subr.bf16.mxu0 0
        %836 = vmatpush1.bf16.msra.mxu0 0
        %837 = vmatprep.subr.bf16.mxu0 0
        %838 = vmatpush1.bf16.msra.mxu0 0
        %839 = vmatprep.subr.bf16.mxu0 0
        %840 = vmatpush1.bf16.msra.mxu0 0
        %841 = vmatprep.subr.bf16.mxu0 0
        %842 = vmatpush1.bf16.msra.mxu0 0
        %843 = vmatprep.subr.bf16.mxu0 0
        %844 = vmatpush1.bf16.msra.mxu0 0
        %845 = vmatprep.mubr.bf16.mxu0 0
        %846 = vmatmul.mubr.bf16.gmra.mrb[0].mxu0 %v812
        %v847 = vpop.f32.mrb[0].mxu0
        %v848 = vadd.f32 0.0, %v847
        %v849 = vpop.f32.mrb[0].mxu0
        %v850 = vadd.f32 0.0, %v849
        %v851 = vpop.f32.mrb[0].mxu0
        %v852 = vpop.f32.mrb[0].mxu0
        %853 = vdwg.mxu0
        %v854 = vadd.f32 %v808, %v848
        %v855 = vadd.f32 %v809, %v850
        %v856 = vxor.u32 %v854, 2147483648
        %v857 = vmul.f32 %v856, 1.442695
        %v858 = vpow.pop %v857
        %v859 = vadd.f32 %v858, 1.0
        %v860 = vrcp.pop %v859
        %v861 = vmul.f32 1.0, %v860
        %v862 = vtanh.pop %v855
        %v863 = vsub.f32 %v862, %v752
        %v864 = vmul.f32 %v861, %v863
        %v865 = vadd.f32 %v752, %v864
        %v866 = vpack.c.bf16 %v806, %v806
        %867 = vmatprep.subr.bf16.mxu0 %v556
        %868 = vmatpush1.bf16.msra.mxu0 %v555
        %869 = vmatprep.subr.bf16.mxu0 %v558
        %870 = vmatpush1.bf16.msra.mxu0 %v557
        %871 = vmatprep.subr.bf16.mxu0 %v560
        %872 = vmatpush1.bf16.msra.mxu0 %v559
        %873 = vmatprep.subr.bf16.mxu0 %v562
        %874 = vmatpush1.bf16.msra.mxu0 %v561
        %875 = vmatprep.subr.bf16.mxu0 %v564
        %876 = vmatpush1.bf16.msra.mxu0 %v563
        %877 = vmatprep.subr.bf16.mxu0 %v566
        %878 = vmatpush1.bf16.msra.mxu0 %v565
        %879 = vmatprep.subr.bf16.mxu0 %v568
        %880 = vmatpush1.bf16.msra.mxu0 %v567
        %881 = vmatprep.subr.bf16.mxu0 %v570
        %882 = vmatpush1.bf16.msra.mxu0 %v569
        %883 = vmatprep.subr.bf16.mxu0 0
        %884 = vmatpush1.bf16.msra.mxu0 0
        %885 = vmatprep.subr.bf16.mxu0 0
        %886 = vmatpush1.bf16.msra.mxu0 0
        %887 = vmatprep.subr.bf16.mxu0 0
        %888 = vmatpush1.bf16.msra.mxu0 0
        %889 = vmatprep.subr.bf16.mxu0 0
        %890 = vmatpush1.bf16.msra.mxu0 0
        %891 = vmatprep.subr.bf16.mxu0 0
        %892 = vmatpush1.bf16.msra.mxu0 0
        %893 = vmatprep.subr.bf16.mxu0 0
        %894 = vmatpush1.bf16.msra.mxu0 0
        %895 = vmatprep.subr.bf16.mxu0 0
        %896 = vmatpush1.bf16.msra.mxu0 0
        %897 = vmatprep.subr.bf16.mxu0 0
        %898 = vmatpush1.bf16.msra.mxu0 0
        %899 = vmatprep.mubr.bf16.mxu0 0
        %900 = vmatmul.mubr.bf16.gmra.mrb[0].mxu0 %v866
        %v901 = vpop.f32.mrb[0].mxu0
        %v902 = vadd.f32 0.0, %v901
        %v903 = vpop.f32.mrb[0].mxu0
        %v904 = vadd.f32 0.0, %v903
        %v905 = vpop.f32.mrb[0].mxu0
        %v906 = vpop.f32.mrb[0].mxu0
        %907 = vdwg.mxu0
        %v908 = vadd.f32 %v810, %v902
        %v909 = vadd.f32 %v811, %v904
        %v910 = vxor.u32 %v908, 2147483648
        %v911 = vmul.f32 %v910, 1.442695
        %v912 = vpow.pop %v911
        %v913 = vadd.f32 %v912, 1.0
        %v914 = vrcp.pop %v913
        %v915 = vmul.f32 1.0, %v914
        %v916 = vtanh.pop %v909
        %v917 = vsub.f32 %v916, %v806
        %v918 = vmul.f32 %v915, %v917
        %v919 = vadd.f32 %v806, %v918
        %s920 = scalar_lea.vmem [#allocation3], 96
        %v921 = vld [vmem:[%s920] sm:$0xff]
        %v922 = vld [vmem:[%s920 + $0x8] sm:$0xff]
        %v923 = vld [vmem:[%s920 + $0x10] sm:$0xff]
        %v924 = vld [vmem:[%s920 + $0x18] sm:$0xff]
        %v925 = vpack.c.bf16 %v865, %v865
        %926 = vmatprep.subr.bf16.mxu0 %v556
        %927 = vmatpush1.bf16.msra.mxu0 %v555
        %928 = vmatprep.subr.bf16.mxu0 %v558
        %929 = vmatpush1.bf16.msra.mxu0 %v557
        %930 = vmatprep.subr.bf16.mxu0 %v560
        %931 = vmatpush1.bf16.msra.mxu0 %v559
        %932 = vmatprep.subr.bf16.mxu0 %v562
        %933 = vmatpush1.bf16.msra.mxu0 %v561
        %934 = vmatprep.subr.bf16.mxu0 %v564
        %935 = vmatpush1.bf16.msra.mxu0 %v563
        %936 = vmatprep.subr.bf16.mxu0 %v566
        %937 = vmatpush1.bf16.msra.mxu0 %v565
        %938 = vmatprep.subr.bf16.mxu0 %v568
        %939 = vmatpush1.bf16.msra.mxu0 %v567
        %940 = vmatprep.subr.bf16.mxu0 %v570
        %941 = vmatpush1.bf16.msra.mxu0 %v569
        %942 = vmatprep.subr.bf16.mxu0 0
        %943 = vmatpush1.bf16.msra.mxu0 0
        %944 = vmatprep.subr.bf16.mxu0 0
        %945 = vmatpush1.bf16.msra.mxu0 0
        %946 = vmatprep.subr.bf16.mxu0 0
        %947 = vmatpush1.bf16.msra.mxu0 0
        %948 = vmatprep.subr.bf16.mxu0 0
        %949 = vmatpush1.bf16.msra.mxu0 0
        %950 = vmatprep.subr.bf16.mxu0 0
        %951 = vmatpush1.bf16.msra.mxu0 0
        %952 = vmatprep.subr.bf16.mxu0 0
        %953 = vmatpush1.bf16.msra.mxu0 0
        %954 = vmatprep.subr.bf16.mxu0 0
        %955 = vmatpush1.bf16.msra.mxu0 0
        %956 = vmatprep.subr.bf16.mxu0 0
        %957 = vmatpush1.bf16.msra.mxu0 0
        %958 = vmatprep.mubr.bf16.mxu0 0
        %959 = vmatmul.mubr.bf16.gmra.mrb[0].mxu0 %v925
        %v960 = vpop.f32.mrb[0].mxu0
        %v961 = vadd.f32 0.0, %v960
        %v962 = vpop.f32.mrb[0].mxu0
        %v963 = vadd.f32 0.0, %v962
        %v964 = vpop.f32.mrb[0].mxu0
        %v965 = vpop.f32.mrb[0].mxu0
        %966 = vdwg.mxu0
        %v967 = vadd.f32 %v921, %v961
        %v968 = vadd.f32 %v922, %v963
        %v969 = vxor.u32 %v967, 2147483648
        %v970 = vmul.f32 %v969, 1.442695
        %v971 = vpow.pop %v970
        %v972 = vadd.f32 %v971, 1.0
        %v973 = vrcp.pop %v972
        %v974 = vmul.f32 1.0, %v973
        %v975 = vtanh.pop %v968
        %v976 = vsub.f32 %v975, %v865
        %v977 = vmul.f32 %v974, %v976
        %v978 = vadd.f32 %v865, %v977
        %v979 = vpack.c.bf16 %v919, %v919
        %980 = vmatprep.subr.bf16.mxu0 %v556
        %981 = vmatpush1.bf16.msra.mxu0 %v555
        %982 = vmatprep.subr.bf16.mxu0 %v558
        %983 = vmatpush1.bf16.msra.mxu0 %v557
        %984 = vmatprep.subr.bf16.mxu0 %v560
        %985 = vmatpush1.bf16.msra.mxu0 %v559
        %986 = vmatprep.subr.bf16.mxu0 %v562
        %987 = vmatpush1.bf16.msra.mxu0 %v561
        %988 = vmatprep.subr.bf16.mxu0 %v564
        %989 = vmatpush1.bf16.msra.mxu0 %v563
        %990 = vmatprep.subr.bf16.mxu0 %v566
        %991 = vmatpush1.bf16.msra.mxu0 %v565
        %992 = vmatprep.subr.bf16.mxu0 %v568
        %993 = vmatpush1.bf16.msra.mxu0 %v567
        %994 = vmatprep.subr.bf16.mxu0 %v570
        %995 = vmatpush1.bf16.msra.mxu0 %v569
        %996 = vmatprep.subr.bf16.mxu0 0
        %997 = vmatpush1.bf16.msra.mxu0 0
        %998 = vmatprep.subr.bf16.mxu0 0
        %999 = vmatpush1.bf16.msra.mxu0 0
        %1000 = vmatprep.subr.bf16.mxu0 0
        %1001 = vmatpush1.bf16.msra.mxu0 0
        %1002 = vmatprep.subr.bf16.mxu0 0
        %1003 = vmatpush1.bf16.msra.mxu0 0
        %1004 = vmatprep.subr.bf16.mxu0 0
        %1005 = vmatpush1.bf16.msra.mxu0 0
        %1006 = vmatprep.subr.bf16.mxu0 0
        %1007 = vmatpush1.bf16.msra.mxu0 0
        %1008 = vmatprep.subr.bf16.mxu0 0
        %1009 = vmatpush1.bf16.msra.mxu0 0
        %1010 = vmatprep.subr.bf16.mxu0 0
        %1011 = vmatpush1.bf16.msra.mxu0 0
        %1012 = vmatprep.mubr.bf16.mxu0 0
        %1013 = vmatmul.mubr.bf16.gmra.mrb[0].mxu0 %v979
        %v1014 = vpop.f32.mrb[0].mxu0
        %v1015 = vadd.f32 0.0, %v1014
        %v1016 = vpop.f32.mrb[0].mxu0
        %v1017 = vadd.f32 0.0, %v1016
        %v1018 = vpop.f32.mrb[0].mxu0
        %v1019 = vpop.f32.mrb[0].mxu0
        %1020 = vdwg.mxu0
        %v1021 = vadd.f32 %v923, %v1015
        %v1022 = vadd.f32 %v924, %v1017
        %v1023 = vxor.u32 %v1021, 2147483648
        %v1024 = vmul.f32 %v1023, 1.442695
        %v1025 = vpow.pop %v1024
        %v1026 = vadd.f32 %v1025, 1.0
        %v1027 = vrcp.pop %v1026
        %v1028 = vmul.f32 1.0, %v1027
        %v1029 = vtanh.pop %v1022
        %v1030 = vsub.f32 %v1029, %v919
        %v1031 = vmul.f32 %v1028, %v1030
        %v1032 = vadd.f32 %v919, %v1031
        %1033 = vst [vmem:[#allocation2] sm:$0xff] %v978
        %1034 = vst [vmem:[#allocation2 + $0x8] sm:$0xff] %v1032
        %p1035 = scmp.eq.s32.totalorder %s28, 1
        // Predicated region
        $region61: #{tpu_custom_call.1} parent=43 // pred_check
          %p1036 = pneg %p1035
        $region62: #{tpu_custom_call.1} parent=43 // pred_check_branch
          %1038 = sbr.rel (%p1036) target = $region64
        $region63: #{tpu_custom_call.1} parent=43 // pred_region
          %v1039 = vld [vmem:[#allocation2] sm:$0xff]
          %v1040 = vld [vmem:[#allocation2 + $0x8] sm:$0xff]
          %v1041 = vld [vmem:[%s4] sm:$0x1]
          %v1043 = vlaneseq
          %v1044 = vshrl.u32 %v1043, 7
          %v1045 = vsub.s32 0, %v1044
          %v1046 = vrot.slane %v1041, %v1045
          %v1048 = vmul.f32 %v1039, %v1046
          %v1049 = vmul.f32 %v1040, %v1046
          %1050 = vadd.xlane.f32.xlu0 %v1048
          %v1051 = vpop.xlane.xlu0 %1050
          %1052 = vadd.xlane.f32.xlu0 %v1049
          %v1053 = vpop.xlane.xlu0 %1052
          %v1054 = vld [vmem:[#allocation4] sm:$0x1]
          %v1056 = vlaneseq
          %v1057 = vshrl.u32 %v1056, 7
          %v1058 = vsub.s32 0, %v1057
          %v1059 = vrot.slane %v1054, %v1058
          %v1061 = vadd.f32 %v1051, %v1059
          %v1062 = vadd.f32 %v1053, %v1059
          %v1063 = vxor.u32 %v1061, 2147483648
          %v1064 = vxor.u32 %v1062, 2147483648
          %v1065 = vmul.f32 %v1063, 1.442695
          %v1066 = vpow.pop %v1065
          %v1067 = vmul.f32 %v1064, 1.442695
          %v1068 = vpow.pop %v1067
          %v1069 = vadd.f32 %v1066, 1.0
          %v1070 = vadd.f32 %v1068, 1.0
          %v1071 = vrcp.pop %v1069
          %v1072 = vmul.f32 1.0, %v1071
          %v1073 = vrcp.pop %v1070
          %v1074 = vmul.f32 1.0, %v1073
          %vm1075 = vcmask 7168
          %1076 = vst.msk [vmem:[%s321] sm:$0xff] %vm1075, %v1072
          %1077 = vst.msk [vmem:[%s321 + $0x8] sm:$0xff] %vm1075, %v1074
        $region64: #{tpu_custom_call.1} parent=43 // pred_fallthru
          _
        %s1078 = smul.u32 2, %s27
        %p1079 = scmp.lt.s32.totalorder %s1078, 1
        %s1080 = scalar_select %p1079, %s1078, 1
        %s1081 = smul.addr %s1080, 8
        %s1082 = scalar_lea.vmem %s6, %s1081
        // Predicated region
        $region65: #{tpu_custom_call.1} parent=43 // pred_check
          %p1083 = pneg %p186
        $region66: #{tpu_custom_call.1} parent=43 // pred_check_branch
          %1085 = sbr.rel (%p1083) target = $region68
        $region67: #{tpu_custom_call.1} parent=43 // pred_region
          %s1086 = smul.u32 2, %s27
        $region68: #{tpu_custom_call.1} parent=43 // pred_fallthru
          _
        // Predicated region
        $region69: #{tpu_custom_call.1} parent=43 // pred_check
          %p1087 = pneg %p186
        $region70: #{tpu_custom_call.1} parent=43 // pred_check_branch
          %1089 = sbr.rel (%p1087) target = $region72
        $region71: #{tpu_custom_call.1} parent=43 // pred_region
          %s1090 = smul.u32 2, %s27
          %p1091 = scmp.lt.s32.totalorder %s1090, 1
          %s1092 = scalar_select %p1091, %s1090, 1
          %s1093 = smul.addr %s1092, 8
          %s1094 = scalar_lea.vmem %s6, %s1093
        $region72: #{tpu_custom_call.1} parent=43 // pred_fallthru
          _
      $region44: #{tpu_custom_call.1} parent=5 // pred_fallthru
        _
      %p1095 = scmp.le.s32.totalorder 2, %s18
      // Predicated region
      $region73: #{tpu_custom_call.1} parent=5 // pred_check
        %p1096 = pneg %p1095
      $region74: #{tpu_custom_call.1} parent=5 // pred_check_branch
        %1098 = sbr.rel (%p1096) target = $region76
      $region75: #{tpu_custom_call.1} parent=5 // pred_region
        %s1099 = ssub.s32 %s18, 2
      $region76: #{tpu_custom_call.1} parent=5 // pred_fallthru
        _
    $region6: #{tpu_custom_call.1} parent=1 // loop_footer
      %s22 = sadd.s32 1, %s18
    $region7: #{tpu_custom_call.1} parent=1 // loop_footer_branch
      %17 = sbr.rel target = $region3
    $region8: #{tpu_custom_call.1} parent=1 // loop_exit
      _
    %1100 = vsyncpa [#allocation6], 1
    %s1101 = scalar_lea.sflag [#allocation6], 1
    %1102 = vsyncpa %s1101, 1
    %1103 = vsyncpa [#allocation8], 1

</llo_original>
